<compile_context>
chip_gen: v7x
topology: tpu7x:2x2x1
jax: 0.10.0
libtpu: 0.0.40
codegen_flags: <defaults>
</compile_context>

<pallas_src>
import functools

import jax
import jax.numpy as jnp
from jax import lax
from jax.experimental import pallas as pl
from jax.experimental.pallas import tpu as pltpu

BN_EPS = 1e-5


# ----------------------------------------------------------------------------
# Fused Pallas kernel: upsample + concat + (conv3x3 + BN + ReLU) x 2
# ----------------------------------------------------------------------------
def _up_fused_kernel(x1_ref, x2_ref, u2t_ref, mask_ref,
                     w1_ref, s1_ref, b1_ref,
                     w2_ref, s2_ref, b2_ref,
                     o_ref, xc_ref, yc_ref, *, W, PAD):
    # x1_ref:   (1, C1, H1*W1)   low-res input, NCHW-flat
    # x2_ref:   (1, C2, H*W)     skip connection, NCHW-flat
    # u2t_ref:  (H1*W1, H*W)     bilinear x2 (align_corners) operator, transposed
    # mask_ref: (9, H*W)         0/1 border masks, one row per 3x3 tap
    # w*_ref:   (Cout, 9*Cin)    conv weights, K index = (kh*3+kw)*Cin + ci
    # s*/b*:    (Cout, 1)        folded BN scale / shift (includes conv bias)
    # o_ref:    (1, Cout, H*W)   output, NCHW-flat (lane-dense last dim)
    # xc_ref:   (Cin1, H*W+2*PAD) VMEM scratch, conv1 input with lane halo
    # yc_ref:   (Cout, H*W+2*PAD) VMEM scratch, conv2 input with lane halo
    HW = o_ref.shape[2]
    C1 = x1_ref.shape[1]
    C2 = x2_ref.shape[1]
    Cin1 = C1 + C2
    Cout = o_ref.shape[1]
    f32 = jnp.float32

    # Scratch hygiene: halo lanes around the data window must hold zeros (they
    # provide the vertical zero-padding directly).  The data window itself is
    # fully overwritten below, so only the halos are cleared (aligned stores).
    xc_ref[:, 0:PAD] = jnp.zeros((Cin1, PAD), f32)
    xc_ref[:, PAD + HW:PAD + HW + PAD] = jnp.zeros((Cin1, PAD), f32)
    yc_ref[:, 0:PAD] = jnp.zeros((Cout, PAD), f32)
    yc_ref[:, PAD + HW:PAD + HW + PAD] = jnp.zeros((Cout, PAD), f32)

    # --- fused upsample (one MXU matmul) + channel concat (row placement) ----
    # conv1 input channel order matches torch.cat([x2, x1_up], dim=1).
    xc_ref[0:C2, PAD:PAD + HW] = x2_ref[0].astype(f32)
    x1_up = jnp.dot(x1_ref[0].astype(f32), u2t_ref[...],
                    preferred_element_type=f32)               # (C1, H*W)
    xc_ref[C2:Cin1, PAD:PAD + HW] = x1_up

    def conv3x3_bn_relu(src_ref, w_ref, scale_ref, shift_ref):
        # im2col^T: 9 statically shifted views of the flat activation stacked
        # along the channel axis.  The zeroed lane halo supplies the vertical
        # zero padding; only horizontal (column-wrap) taps need a 0/1 mask.
        pieces = []
        for kh in range(3):
            for kw in range(3):
                t = kh * 3 + kw
                shift = (kh - 1) * W + (kw - 1)
                shifted = src_ref[:, PAD + shift:PAD + shift + HW]
                if kw == 1:
                    pieces.append(shifted)                    # halo handles it
                else:
                    pieces.append(shifted * mask_ref[t:t + 1, :])
        patches = jnp.concatenate(pieces, axis=0)             # (9*Cin, H*W)
        # Single big MXU contraction (K = 9*Cin), then folded BN affine + ReLU.
        acc = jnp.dot(w_ref[...], patches, preferred_element_type=f32)
        return jnp.maximum(acc * scale_ref[...] + shift_ref[...], 0.0)

    y1 = conv3x3_bn_relu(xc_ref, w1_ref, s1_ref, b1_ref)      # (Cout, H*W)
    yc_ref[:, PAD:PAD + HW] = y1                              # stays in VMEM
    y2 = conv3x3_bn_relu(yc_ref, w2_ref, s2_ref, b2_ref)      # (Cout, H*W)

    o_ref[0] = y2.astype(o_ref.dtype)                         # lane-dense store


# ----------------------------------------------------------------------------
# Host-side (tiny, static) operators
# ----------------------------------------------------------------------------
def _bilinear_up_matrix(n_in, n_out):
    """(n_out, n_in) align_corners=True bilinear interpolation operator."""
    if n_in == 1:
        return jnp.ones((n_out, 1), jnp.float32)
    pos = jnp.arange(n_out, dtype=jnp.float32) * (n_in - 1) / (n_out - 1)
    lo = jnp.floor(pos).astype(jnp.int32)
    hi = jnp.minimum(lo + 1, n_in - 1)
    frac = pos - lo.astype(jnp.float32)
    eye = jnp.eye(n_in, dtype=jnp.float32)
    return eye[lo] * (1.0 - frac)[:, None] + eye[hi] * frac[:, None]


def _border_masks(H, W):
    """(9, H*W) 0/1 map: which 3x3 tap reads fall inside the image."""
    p = jnp.arange(H * W, dtype=jnp.int32)
    py, px = p // W, p % W
    rows = []
    for kh in range(3):
        for kw in range(3):
            dy, dx = kh - 1, kw - 1
            ok = (py + dy >= 0) & (py + dy < H) & (px + dx >= 0) & (px + dx < W)
            rows.append(ok)
    return jnp.stack(rows, axis=0).astype(jnp.float32)


# ----------------------------------------------------------------------------
# Public forward wrapper (NCHW in, NCHW out)
# ----------------------------------------------------------------------------
def up_forward(params, x1_nchw, x2_nchw):
    B, C1, H1, W1 = x1_nchw.shape
    B2, C2, H, W = x2_nchw.shape
    assert B == B2 and H == 2 * H1 and W == 2 * W1
    Cout = params["w2_mat"].shape[0]
    Cin1 = C1 + C2
    HW = H * W

    # Layout plumbing only: contiguous NCHW -> flat spatial (free reshapes).
    x1f = x1_nchw.reshape(B, C1, H1 * W1)
    x2f = x2_nchw.reshape(B, C2, HW)

    # Bilinear x2 upsample as one dense (H1*W1, H*W) operator (Kronecker of
    # the two 1-D interpolators), consumed by the kernel as an MXU matmul.
    u_h = _bilinear_up_matrix(H1, H)
    u_w = _bilinear_up_matrix(W1, W)
    u2t = jnp.kron(u_h, u_w).T.astype(jnp.float32)            # (H1*W1, H*W)

    mask9 = _border_masks(H, W)                               # (9, H*W)

    PAD = ((W + 1 + 127) // 128) * 128                        # lane-aligned halo

    kernel = functools.partial(_up_fused_kernel, W=W, PAD=PAD)

    flops = 2 * B * HW * 9 * (Cin1 + Cout) * Cout + 2 * B * C1 * (H1 * W1) * HW
    bytes_accessed = 4 * (x1f.size + x2f.size + B * Cout * HW + u2t.size
                          + mask9.size + params["w1_mat"].size
                          + params["w2_mat"].size + 4 * Cout)

    out_flat = pl.pallas_call(
        kernel,
        out_shape=jax.ShapeDtypeStruct((B, Cout, HW), x2_nchw.dtype),
        grid_spec=pltpu.PrefetchScalarGridSpec(
            num_scalar_prefetch=0,
            grid=(B,),
            in_specs=[
                pl.BlockSpec((1, C1, H1 * W1), lambda b: (b, 0, 0)),
                pl.BlockSpec((1, C2, HW), lambda b: (b, 0, 0)),
                pl.BlockSpec((H1 * W1, HW), lambda b: (0, 0)),
                pl.BlockSpec((9, HW), lambda b: (0, 0)),
                pl.BlockSpec((Cout, 9 * Cin1), lambda b: (0, 0)),
                pl.BlockSpec((Cout, 1), lambda b: (0, 0)),
                pl.BlockSpec((Cout, 1), lambda b: (0, 0)),
                pl.BlockSpec((Cout, 9 * Cout), lambda b: (0, 0)),
                pl.BlockSpec((Cout, 1), lambda b: (0, 0)),
                pl.BlockSpec((Cout, 1), lambda b: (0, 0)),
            ],
            out_specs=pl.BlockSpec((1, Cout, HW), lambda b: (b, 0, 0)),
            scratch_shapes=[
                pltpu.VMEM((Cin1, HW + 2 * PAD), jnp.float32),
                pltpu.VMEM((Cout, HW + 2 * PAD), jnp.float32),
            ],
        ),
        compiler_params=pltpu.CompilerParams(
            dimension_semantics=("parallel",),
            vmem_limit_bytes=32 * 1024 * 1024,
        ),
        cost_estimate=pl.CostEstimate(
            flops=flops, transcendentals=0, bytes_accessed=bytes_accessed),
    )(x1f, x2f, u2t, mask9,
      params["w1_mat"], params["scale1"], params["shift1"],
      params["w2_mat"], params["scale2"], params["shift2"])

    return out_flat.reshape(B, Cout, H, W)                    # free reshape


# ----------------------------------------------------------------------------
# Deterministic synthetic parameters
# ----------------------------------------------------------------------------
def init_up_params(key, in_ch, out_ch):
    ks = jax.random.split(key, 12)

    def conv_bn(kw, kb, kg, kbeta, km, kv, cin, cout):
        bound = 1.0 / float(cin * 9) ** 0.5
        w = jax.random.uniform(kw, (3, 3, cin, cout), jnp.float32, -bound, bound)
        bias = jax.random.uniform(kb, (cout,), jnp.float32, -bound, bound)
        gamma = 1.0 + 0.1 * jax.random.normal(kg, (cout,), jnp.float32)
        beta = 0.1 * jax.random.normal(kbeta, (cout,), jnp.float32)
        mean = 0.1 * jax.random.normal(km, (cout,), jnp.float32)
        var = 1.0 + 0.1 * jax.random.uniform(kv, (cout,), jnp.float32)
        # Inference-mode BN + conv bias folded into a per-channel affine.
        scale = gamma / jnp.sqrt(var + BN_EPS)
        shift = beta + (bias - mean) * scale
        # (Cout, 9*Cin) weight slab; K index = (kh*3 + kw)*Cin + ci.
        w_mat = jnp.transpose(w, (3, 0, 1, 2)).reshape(cout, 9 * cin)
        return dict(w_hwio=w, bias=bias, gamma=gamma, beta=beta, mean=mean,
                    var=var, w_mat=w_mat, scale=scale.reshape(cout, 1),
                    shift=shift.reshape(cout, 1))

    c1 = conv_bn(*ks[0:6], in_ch, out_ch)
    c2 = conv_bn(*ks[6:12], out_ch, out_ch)
    return dict(
        w1_hwio=c1["w_hwio"], b1=c1["bias"], g1=c1["gamma"], beta1=c1["beta"],
        m1=c1["mean"], v1=c1["var"],
        w1_mat=c1["w_mat"], scale1=c1["scale"], shift1=c1["shift"],
        w2_hwio=c2["w_hwio"], b2=c2["bias"], g2=c2["gamma"], beta2=c2["beta"],
        m2=c2["mean"], v2=c2["var"],
        w2_mat=c2["w_mat"], scale2=c2["scale"], shift2=c2["shift"],
    )


# ----------------------------------------------------------------------------
# Pure-JAX reference (independent implementation) for a numerical check
# ----------------------------------------------------------------------------
def _ref_upsample_x2_align_corners(x):                        # NCHW
    B, C, H, W = x.shape

    def coords(n_in, n_out):
        pos = jnp.arange(n_out, dtype=jnp.float32) * (n_in - 1) / (n_out - 1)
        lo = jnp.floor(pos).astype(jnp.int32)
        hi = jnp.minimum(lo + 1, n_in - 1)
        return lo, hi, pos - lo.astype(jnp.float32)

    hlo, hhi, hf = coords(H, 2 * H)
    wlo, whi, wf = coords(W, 2 * W)
    rows = (x[:, :, hlo, :] * (1.0 - hf)[None, None, :, None]
            + x[:, :, hhi, :] * hf[None, None, :, None])
    return (rows[:, :, :, wlo] * (1.0 - wf)[None, None, None, :]
            + rows[:, :, :, whi] * wf[None, None, None, :])


def up_reference(params, x1_nchw, x2_nchw):
    x = jnp.concatenate(
        [x2_nchw, _ref_upsample_x2_align_corners(x1_nchw)], axis=1)

    def block(x, w_hwio, bias, gamma, beta, mean, var):
        y = lax.conv_general_dilated(
            x, w_hwio, window_strides=(1, 1), padding=((1, 1), (1, 1)),
            dimension_numbers=("NCHW", "HWIO", "NCHW"),
            precision=lax.Precision.HIGHEST)
        y = y + bias[None, :, None, None]
        y = ((y - mean[None, :, None, None])
             / jnp.sqrt(var[None, :, None, None] + BN_EPS)
             * gamma[None, :, None, None] + beta[None, :, None, None])
        return jnp.maximum(y, 0.0)

    y = block(x, params["w1_hwio"], params["b1"], params["g1"],
              params["beta1"], params["m1"], params["v1"])
    y = block(y, params["w2_hwio"], params["b2"], params["g2"],
              params["beta2"], params["m2"], params["v2"])
    return y


if __name__ == "__main__":
    key = jax.random.PRNGKey(0)
    k_x1, k_x2, k_p = jax.random.split(key, 3)

    # x1: low-res feature map, x2: skip connection at 2x resolution.
    B, C1, C2 = 2, 4, 4
    H1, W1 = 8, 8
    x1 = jax.random.normal(k_x1, (B, C1, H1, W1), jnp.float32)
    x2 = jax.random.normal(k_x2, (B, C2, 2 * H1, 2 * W1), jnp.float32)

    in_ch, out_ch = C1 + C2, 8                # UP(inchanels=8, out=8)
    params = init_up_params(k_p, in_ch, out_ch)

    out = jax.jit(up_forward)(params, x1, x2)
    out = jax.block_until_ready(out)
    assert out.shape == (B, out_ch, 2 * H1, 2 * W1), out.shape

    ref = jax.block_until_ready(jax.jit(up_reference)(params, x1, x2))
    max_err = float(jnp.max(jnp.abs(out - ref)))
    assert max_err < 2e-2, f"max abs error vs reference: {max_err}"

    print("KERNEL_OK")
</pallas_src>

<mosaic_0001>
module attributes {stable_mosaic.version = 11 : i64} {
  func.func @_up_fused_kernel(%arg0: i32, %arg1: memref<1x4x64xf32, #tpu.memory_space<vmem>>, %arg2: memref<1x4x256xf32, #tpu.memory_space<vmem>>, %arg3: memref<64x256xf32, #tpu.memory_space<vmem>>, %arg4: memref<9x256xf32, #tpu.memory_space<vmem>>, %arg5: memref<8x72xf32, #tpu.memory_space<vmem>>, %arg6: memref<8x1xf32, #tpu.memory_space<vmem>>, %arg7: memref<8x1xf32, #tpu.memory_space<vmem>>, %arg8: memref<8x72xf32, #tpu.memory_space<vmem>>, %arg9: memref<8x1xf32, #tpu.memory_space<vmem>>, %arg10: memref<8x1xf32, #tpu.memory_space<vmem>>, %arg11: memref<1x8x256xf32, #tpu.memory_space<vmem>>, %arg12: memref<8x512xf32, #tpu.memory_space<vmem>>, %arg13: memref<8x512xf32, #tpu.memory_space<vmem>>) attributes {dimension_semantics = [#tpu.dimension_semantics<parallel>], iteration_bounds = array<i64: 2>, scalar_prefetch = 0 : i64, scratch_operands = 2 : i64, tpu.core_type = #tpu.core_type<tc>, window_params = [{transform_indices = @transform_0, window_bounds = array<i64: 1, 4, 64>}, {transform_indices = @transform_1, window_bounds = array<i64: 1, 4, 256>}, {pipeline_mode = #tpu.pipeline_mode<synchronous>, transform_indices = @transform_2, window_bounds = array<i64: 64, 256>}, {pipeline_mode = #tpu.pipeline_mode<synchronous>, transform_indices = @transform_3, window_bounds = array<i64: 9, 256>}, {pipeline_mode = #tpu.pipeline_mode<synchronous>, transform_indices = @transform_4, window_bounds = array<i64: 8, 72>}, {pipeline_mode = #tpu.pipeline_mode<synchronous>, transform_indices = @transform_5, window_bounds = array<i64: 8, 1>}, {pipeline_mode = #tpu.pipeline_mode<synchronous>, transform_indices = @transform_6, window_bounds = array<i64: 8, 1>}, {pipeline_mode = #tpu.pipeline_mode<synchronous>, transform_indices = @transform_7, window_bounds = array<i64: 8, 72>}, {pipeline_mode = #tpu.pipeline_mode<synchronous>, transform_indices = @transform_8, window_bounds = array<i64: 8, 1>}, {pipeline_mode = #tpu.pipeline_mode<synchronous>, transform_indices = @transform_9, window_bounds = array<i64: 8, 1>}, {transform_indices = @transform_10, window_bounds = array<i64: 1, 8, 256>}]} {
    %cst = arith.constant 0.000000e+00 : f32
    %0 = vector.broadcast %cst : f32 to vector<8x128xf32>
    %c0 = arith.constant 0 : index
    %c0_0 = arith.constant 0 : index
    %1 = vector.load %arg12[%c0, %c0_0] : memref<8x512xf32, #tpu.memory_space<vmem>>, vector<8x128xf32>
    tpu.vector_store %arg12[%c0, %c0_0], %0 {strides = array<i32>} : memref<8x512xf32, #tpu.memory_space<vmem>>, vector<8x128xf32>,
    %cst_1 = arith.constant 0.000000e+00 : f32
    %2 = vector.broadcast %cst_1 : f32 to vector<8x128xf32>
    %c0_2 = arith.constant 0 : index
    %c384 = arith.constant 384 : index
    %3 = vector.load %arg12[%c0_2, %c384] : memref<8x512xf32, #tpu.memory_space<vmem>>, vector<8x128xf32>
    tpu.vector_store %arg12[%c0_2, %c384], %2 {strides = array<i32>} : memref<8x512xf32, #tpu.memory_space<vmem>>, vector<8x128xf32>,
    %cst_3 = arith.constant 0.000000e+00 : f32
    %4 = vector.broadcast %cst_3 : f32 to vector<8x128xf32>
    %c0_4 = arith.constant 0 : index
    %c0_5 = arith.constant 0 : index
    %5 = vector.load %arg13[%c0_4, %c0_5] : memref<8x512xf32, #tpu.memory_space<vmem>>, vector<8x128xf32>
    tpu.vector_store %arg13[%c0_4, %c0_5], %4 {strides = array<i32>} : memref<8x512xf32, #tpu.memory_space<vmem>>, vector<8x128xf32>,
    %cst_6 = arith.constant 0.000000e+00 : f32
    %6 = vector.broadcast %cst_6 : f32 to vector<8x128xf32>
    %c0_7 = arith.constant 0 : index
    %c384_8 = arith.constant 384 : index
    %7 = vector.load %arg13[%c0_7, %c384_8] : memref<8x512xf32, #tpu.memory_space<vmem>>, vector<8x128xf32>
    tpu.vector_store %arg13[%c0_7, %c384_8], %6 {strides = array<i32>} : memref<8x512xf32, #tpu.memory_space<vmem>>, vector<8x128xf32>,
    %c0_9 = arith.constant 0 : index
    %c0_10 = arith.constant 0 : index
    %c0_11 = arith.constant 0 : index
    %8 = vector.load %arg2[%c0_9, %c0_10, %c0_11] : memref<1x4x256xf32, #tpu.memory_space<vmem>>, vector<1x4x256xf32>
    %9 = vector.shape_cast %8 : vector<1x4x256xf32> to vector<4x256xf32>
    %c0_12 = arith.constant 0 : index
    %c128 = arith.constant 128 : index
    %10 = vector.load %arg12[%c0_12, %c128] : memref<8x512xf32, #tpu.memory_space<vmem>>, vector<4x256xf32>
    tpu.vector_store %arg12[%c0_12, %c128], %9 {strides = array<i32>} : memref<8x512xf32, #tpu.memory_space<vmem>>, vector<4x256xf32>,
    %c0_13 = arith.constant 0 : index
    %c0_14 = arith.constant 0 : index
    %c0_15 = arith.constant 0 : index
    %11 = vector.load %arg1[%c0_13, %c0_14, %c0_15] : memref<1x4x64xf32, #tpu.memory_space<vmem>>, vector<1x4x64xf32>
    %12 = vector.shape_cast %11 : vector<1x4x64xf32> to vector<4x64xf32>
    %c0_16 = arith.constant 0 : index
    %c0_17 = arith.constant 0 : index
    %13 = vector.load %arg3[%c0_16, %c0_17] : memref<64x256xf32, #tpu.memory_space<vmem>>, vector<64x256xf32>
    %cst_18 = arith.constant dense<0.000000e+00> : vector<4x256xf32>
    %14 = tpu.matmul %12, %13, %cst_18 {dimension_numbers = #tpu.dot_dimension_numbers<[1], [0], [0], [1], [0, 0, 1, 1], [], []>} : vector<4x64xf32>, vector<64x256xf32>, vector<4x256xf32> -> vector<4x256xf32>
    %c4 = arith.constant 4 : index
    %c128_19 = arith.constant 128 : index
    %15 = vector.load %arg12[%c4, %c128_19] : memref<8x512xf32, #tpu.memory_space<vmem>>, vector<4x256xf32>
    tpu.vector_store %arg12[%c4, %c128_19], %14 {strides = array<i32>} : memref<8x512xf32, #tpu.memory_space<vmem>>, vector<4x256xf32>,
    %c0_20 = arith.constant 0 : index
    %c111 = arith.constant 111 : index
    %16 = vector.load %arg12[%c0_20, %c111] : memref<8x512xf32, #tpu.memory_space<vmem>>, vector<8x256xf32>
    %c0_21 = arith.constant 0 : index
    %c0_22 = arith.constant 0 : index
    %17 = vector.load %arg4[%c0_21, %c0_22] : memref<9x256xf32, #tpu.memory_space<vmem>>, vector<1x256xf32>
    %18 = vector.broadcast %17 : vector<1x256xf32> to vector<8x256xf32>
    %19 = arith.mulf %16, %18 : vector<8x256xf32>
    %c0_23 = arith.constant 0 : index
    %c112 = arith.constant 112 : index
    %20 = vector.load %arg12[%c0_23, %c112] : memref<8x512xf32, #tpu.memory_space<vmem>>, vector<8x256xf32>
    %c0_24 = arith.constant 0 : index
    %c113 = arith.constant 113 : index
    %21 = vector.load %arg12[%c0_24, %c113] : memref<8x512xf32, #tpu.memory_space<vmem>>, vector<8x256xf32>
    %c2 = arith.constant 2 : index
    %c0_25 = arith.constant 0 : index
    %22 = vector.load %arg4[%c2, %c0_25] : memref<9x256xf32, #tpu.memory_space<vmem>>, vector<1x256xf32>
    %23 = vector.broadcast %22 : vector<1x256xf32> to vector<8x256xf32>
    %24 = arith.mulf %21, %23 : vector<8x256xf32>
    %c0_26 = arith.constant 0 : index
    %c127 = arith.constant 127 : index
    %25 = vector.load %arg12[%c0_26, %c127] : memref<8x512xf32, #tpu.memory_space<vmem>>, vector<8x256xf32>
    %c3 = arith.constant 3 : index
    %c0_27 = arith.constant 0 : index
    %26 = vector.load %arg4[%c3, %c0_27] : memref<9x256xf32, #tpu.memory_space<vmem>>, vector<1x256xf32>
    %27 = vector.broadcast %26 : vector<1x256xf32> to vector<8x256xf32>
    %28 = arith.mulf %25, %27 : vector<8x256xf32>
    %c0_28 = arith.constant 0 : index
    %c128_29 = arith.constant 128 : index
    %29 = vector.load %arg12[%c0_28, %c128_29] : memref<8x512xf32, #tpu.memory_space<vmem>>, vector<8x256xf32>
    %c0_30 = arith.constant 0 : index
    %c129 = arith.constant 129 : index
    %30 = vector.load %arg12[%c0_30, %c129] : memref<8x512xf32, #tpu.memory_space<vmem>>, vector<8x256xf32>
    %c5 = arith.constant 5 : index
    %c0_31 = arith.constant 0 : index
    %31 = vector.load %arg4[%c5, %c0_31] : memref<9x256xf32, #tpu.memory_space<vmem>>, vector<1x256xf32>
    %32 = vector.broadcast %31 : vector<1x256xf32> to vector<8x256xf32>
    %33 = arith.mulf %30, %32 : vector<8x256xf32>
    %c0_32 = arith.constant 0 : index
    %c143 = arith.constant 143 : index
    %34 = vector.load %arg12[%c0_32, %c143] : memref<8x512xf32, #tpu.memory_space<vmem>>, vector<8x256xf32>
    %c6 = arith.constant 6 : index
    %c0_33 = arith.constant 0 : index
    %35 = vector.load %arg4[%c6, %c0_33] : memref<9x256xf32, #tpu.memory_space<vmem>>, vector<1x256xf32>
    %36 = vector.broadcast %35 : vector<1x256xf32> to vector<8x256xf32>
    %37 = arith.mulf %34, %36 : vector<8x256xf32>
    %c0_34 = arith.constant 0 : index
    %c144 = arith.constant 144 : index
    %38 = vector.load %arg12[%c0_34, %c144] : memref<8x512xf32, #tpu.memory_space<vmem>>, vector<8x256xf32>
    %c0_35 = arith.constant 0 : index
    %c145 = arith.constant 145 : index
    %39 = vector.load %arg12[%c0_35, %c145] : memref<8x512xf32, #tpu.memory_space<vmem>>, vector<8x256xf32>
    %c8 = arith.constant 8 : index
    %c0_36 = arith.constant 0 : index
    %40 = vector.load %arg4[%c8, %c0_36] : memref<9x256xf32, #tpu.memory_space<vmem>>, vector<1x256xf32>
    %41 = vector.broadcast %40 : vector<1x256xf32> to vector<8x256xf32>
    %42 = arith.mulf %39, %41 : vector<8x256xf32>
    %43 = tpu.concatenate %19, %20, %24, %28, %29, %33, %37, %38, %42 in 0 : vector<8x256xf32>, vector<8x256xf32>, vector<8x256xf32>, vector<8x256xf32>, vector<8x256xf32>, vector<8x256xf32>, vector<8x256xf32>, vector<8x256xf32>, vector<8x256xf32> -> vector<72x256xf32>
    %c0_37 = arith.constant 0 : index
    %c0_38 = arith.constant 0 : index
    %44 = vector.load %arg5[%c0_37, %c0_38] : memref<8x72xf32, #tpu.memory_space<vmem>>, vector<8x72xf32>
    %cst_39 = arith.constant dense<0.000000e+00> : vector<8x256xf32>
    %45 = tpu.matmul %44, %43, %cst_39 {dimension_numbers = #tpu.dot_dimension_numbers<[1], [0], [0], [1], [0, 0, 1, 1], [], []>} : vector<8x72xf32>, vector<72x256xf32>, vector<8x256xf32> -> vector<8x256xf32>
    %c0_40 = arith.constant 0 : index
    %c0_41 = arith.constant 0 : index
    %46 = vector.load %arg6[%c0_40, %c0_41] : memref<8x1xf32, #tpu.memory_space<vmem>>, vector<8x1xf32>
    %47 = vector.broadcast %46 : vector<8x1xf32> to vector<8x256xf32>
    %48 = arith.mulf %45, %47 : vector<8x256xf32>
    %c0_42 = arith.constant 0 : index
    %c0_43 = arith.constant 0 : index
    %49 = vector.load %arg7[%c0_42, %c0_43] : memref<8x1xf32, #tpu.memory_space<vmem>>, vector<8x1xf32>
    %50 = vector.broadcast %49 : vector<8x1xf32> to vector<8x256xf32>
    %51 = arith.addf %48, %50 : vector<8x256xf32>
    %cst_44 = arith.constant 0.000000e+00 : f32
    %52 = vector.broadcast %cst_44 : f32 to vector<8x256xf32>
    %53 = arith.maximumf %51, %52 : vector<8x256xf32>
    %c0_45 = arith.constant 0 : index
    %c128_46 = arith.constant 128 : index
    %54 = vector.load %arg13[%c0_45, %c128_46] : memref<8x512xf32, #tpu.memory_space<vmem>>, vector<8x256xf32>
    tpu.vector_store %arg13[%c0_45, %c128_46], %53 {strides = array<i32>} : memref<8x512xf32, #tpu.memory_space<vmem>>, vector<8x256xf32>,
    %c0_47 = arith.constant 0 : index
    %c111_48 = arith.constant 111 : index
    %55 = vector.load %arg13[%c0_47, %c111_48] : memref<8x512xf32, #tpu.memory_space<vmem>>, vector<8x256xf32>
    %c0_49 = arith.constant 0 : index
    %c0_50 = arith.constant 0 : index
    %56 = vector.load %arg4[%c0_49, %c0_50] : memref<9x256xf32, #tpu.memory_space<vmem>>, vector<1x256xf32>
    %57 = vector.broadcast %56 : vector<1x256xf32> to vector<8x256xf32>
    %58 = arith.mulf %55, %57 : vector<8x256xf32>
    %c0_51 = arith.constant 0 : index
    %c112_52 = arith.constant 112 : index
    %59 = vector.load %arg13[%c0_51, %c112_52] : memref<8x512xf32, #tpu.memory_space<vmem>>, vector<8x256xf32>
    %c0_53 = arith.constant 0 : index
    %c113_54 = arith.constant 113 : index
    %60 = vector.load %arg13[%c0_53, %c113_54] : memref<8x512xf32, #tpu.memory_space<vmem>>, vector<8x256xf32>
    %c2_55 = arith.constant 2 : index
    %c0_56 = arith.constant 0 : index
    %61 = vector.load %arg4[%c2_55, %c0_56] : memref<9x256xf32, #tpu.memory_space<vmem>>, vector<1x256xf32>
    %62 = vector.broadcast %61 : vector<1x256xf32> to vector<8x256xf32>
    %63 = arith.mulf %60, %62 : vector<8x256xf32>
    %c0_57 = arith.constant 0 : index
    %c127_58 = arith.constant 127 : index
    %64 = vector.load %arg13[%c0_57, %c127_58] : memref<8x512xf32, #tpu.memory_space<vmem>>, vector<8x256xf32>
    %c3_59 = arith.constant 3 : index
    %c0_60 = arith.constant 0 : index
    %65 = vector.load %arg4[%c3_59, %c0_60] : memref<9x256xf32, #tpu.memory_space<vmem>>, vector<1x256xf32>
    %66 = vector.broadcast %65 : vector<1x256xf32> to vector<8x256xf32>
    %67 = arith.mulf %64, %66 : vector<8x256xf32>
    %c0_61 = arith.constant 0 : index
    %c128_62 = arith.constant 128 : index
    %68 = vector.load %arg13[%c0_61, %c128_62] : memref<8x512xf32, #tpu.memory_space<vmem>>, vector<8x256xf32>
    %c0_63 = arith.constant 0 : index
    %c129_64 = arith.constant 129 : index
    %69 = vector.load %arg13[%c0_63, %c129_64] : memref<8x512xf32, #tpu.memory_space<vmem>>, vector<8x256xf32>
    %c5_65 = arith.constant 5 : index
    %c0_66 = arith.constant 0 : index
    %70 = vector.load %arg4[%c5_65, %c0_66] : memref<9x256xf32, #tpu.memory_space<vmem>>, vector<1x256xf32>
    %71 = vector.broadcast %70 : vector<1x256xf32> to vector<8x256xf32>
    %72 = arith.mulf %69, %71 : vector<8x256xf32>
    %c0_67 = arith.constant 0 : index
    %c143_68 = arith.constant 143 : index
    %73 = vector.load %arg13[%c0_67, %c143_68] : memref<8x512xf32, #tpu.memory_space<vmem>>, vector<8x256xf32>
    %c6_69 = arith.constant 6 : index
    %c0_70 = arith.constant 0 : index
    %74 = vector.load %arg4[%c6_69, %c0_70] : memref<9x256xf32, #tpu.memory_space<vmem>>, vector<1x256xf32>
    %75 = vector.broadcast %74 : vector<1x256xf32> to vector<8x256xf32>
    %76 = arith.mulf %73, %75 : vector<8x256xf32>
    %c0_71 = arith.constant 0 : index
    %c144_72 = arith.constant 144 : index
    %77 = vector.load %arg13[%c0_71, %c144_72] : memref<8x512xf32, #tpu.memory_space<vmem>>, vector<8x256xf32>
    %c0_73 = arith.constant 0 : index
    %c145_74 = arith.constant 145 : index
    %78 = vector.load %arg13[%c0_73, %c145_74] : memref<8x512xf32, #tpu.memory_space<vmem>>, vector<8x256xf32>
    %c8_75 = arith.constant 8 : index
    %c0_76 = arith.constant 0 : index
    %79 = vector.load %arg4[%c8_75, %c0_76] : memref<9x256xf32, #tpu.memory_space<vmem>>, vector<1x256xf32>
    %80 = vector.broadcast %79 : vector<1x256xf32> to vector<8x256xf32>
    %81 = arith.mulf %78, %80 : vector<8x256xf32>
    %82 = tpu.concatenate %58, %59, %63, %67, %68, %72, %76, %77, %81 in 0 : vector<8x256xf32>, vector<8x256xf32>, vector<8x256xf32>, vector<8x256xf32>, vector<8x256xf32>, vector<8x256xf32>, vector<8x256xf32>, vector<8x256xf32>, vector<8x256xf32> -> vector<72x256xf32>
    %c0_77 = arith.constant 0 : index
    %c0_78 = arith.constant 0 : index
    %83 = vector.load %arg8[%c0_77, %c0_78] : memref<8x72xf32, #tpu.memory_space<vmem>>, vector<8x72xf32>
    %cst_79 = arith.constant dense<0.000000e+00> : vector<8x256xf32>
    %84 = tpu.matmul %83, %82, %cst_79 {dimension_numbers = #tpu.dot_dimension_numbers<[1], [0], [0], [1], [0, 0, 1, 1], [], []>} : vector<8x72xf32>, vector<72x256xf32>, vector<8x256xf32> -> vector<8x256xf32>
    %c0_80 = arith.constant 0 : index
    %c0_81 = arith.constant 0 : index
    %85 = vector.load %arg9[%c0_80, %c0_81] : memref<8x1xf32, #tpu.memory_space<vmem>>, vector<8x1xf32>
    %86 = vector.broadcast %85 : vector<8x1xf32> to vector<8x256xf32>
    %87 = arith.mulf %84, %86 : vector<8x256xf32>
    %c0_82 = arith.constant 0 : index
    %c0_83 = arith.constant 0 : index
    %88 = vector.load %arg10[%c0_82, %c0_83] : memref<8x1xf32, #tpu.memory_space<vmem>>, vector<8x1xf32>
    %89 = vector.broadcast %88 : vector<8x1xf32> to vector<8x256xf32>
    %90 = arith.addf %87, %89 : vector<8x256xf32>
    %cst_84 = arith.constant 0.000000e+00 : f32
    %91 = vector.broadcast %cst_84 : f32 to vector<8x256xf32>
    %92 = arith.maximumf %90, %91 : vector<8x256xf32>
    %c0_85 = arith.constant 0 : index
    %c0_86 = arith.constant 0 : index
    %c0_87 = arith.constant 0 : index
    %93 = vector.load %arg11[%c0_85, %c0_86, %c0_87] : memref<1x8x256xf32, #tpu.memory_space<vmem>>, vector<1x8x256xf32>
    %94 = vector.shape_cast %93 : vector<1x8x256xf32> to vector<8x256xf32>
    %95 = vector.shape_cast %92 : vector<8x256xf32> to vector<1x8x256xf32>
    tpu.vector_store %arg11[%c0_85, %c0_86, %c0_87], %95 {strides = array<i32>} : memref<1x8x256xf32, #tpu.memory_space<vmem>>, vector<1x8x256xf32>,
    return
  }
  func.func @transform_0(%arg0: i32) -> (i32, i32, i32) {
    %c0_i32 = arith.constant 0 : i32
    %c0_i32_0 = arith.constant 0 : i32
    %c0_i32_1 = arith.constant 0 : i32
    return %arg0, %c0_i32, %c0_i32_0 : i32, i32, i32
  }
  func.func @transform_1(%arg0: i32) -> (i32, i32, i32) {
    %c0_i32 = arith.constant 0 : i32
    %c0_i32_0 = arith.constant 0 : i32
    %c0_i32_1 = arith.constant 0 : i32
    return %arg0, %c0_i32, %c0_i32_0 : i32, i32, i32
  }
  func.func @transform_2(%arg0: i32) -> (i32, i32) {
    %c0_i32 = arith.constant 0 : i32
    %c0_i32_0 = arith.constant 0 : i32
    %c0_i32_1 = arith.constant 0 : i32
    return %c0_i32, %c0_i32_0 : i32, i32
  }
  func.func @transform_3(%arg0: i32) -> (i32, i32) {
    %c0_i32 = arith.constant 0 : i32
    %c0_i32_0 = arith.constant 0 : i32
    %c0_i32_1 = arith.constant 0 : i32
    return %c0_i32, %c0_i32_0 : i32, i32
  }
  func.func @transform_4(%arg0: i32) -> (i32, i32) {
    %c0_i32 = arith.constant 0 : i32
    %c0_i32_0 = arith.constant 0 : i32
    %c0_i32_1 = arith.constant 0 : i32
    return %c0_i32, %c0_i32_0 : i32, i32
  }
  func.func @transform_5(%arg0: i32) -> (i32, i32) {
    %c0_i32 = arith.constant 0 : i32
    %c0_i32_0 = arith.constant 0 : i32
    %c0_i32_1 = arith.constant 0 : i32
    return %c0_i32, %c0_i32_0 : i32, i32
  }
  func.func @transform_6(%arg0: i32) -> (i32, i32) {
    %c0_i32 = arith.constant 0 : i32
    %c0_i32_0 = arith.constant 0 : i32
    %c0_i32_1 = arith.constant 0 : i32
    return %c0_i32, %c0_i32_0 : i32, i32
  }
  func.func @transform_7(%arg0: i32) -> (i32, i32) {
    %c0_i32 = arith.constant 0 : i32
    %c0_i32_0 = arith.constant 0 : i32
    %c0_i32_1 = arith.constant 0 : i32
    return %c0_i32, %c0_i32_0 : i32, i32
  }
  func.func @transform_8(%arg0: i32) -> (i32, i32) {
    %c0_i32 = arith.constant 0 : i32
    %c0_i32_0 = arith.constant 0 : i32
    %c0_i32_1 = arith.constant 0 : i32
    return %c0_i32, %c0_i32_0 : i32, i32
  }
  func.func @transform_9(%arg0: i32) -> (i32, i32) {
    %c0_i32 = arith.constant 0 : i32
    %c0_i32_0 = arith.constant 0 : i32
    %c0_i32_1 = arith.constant 0 : i32
    return %c0_i32, %c0_i32_0 : i32, i32
  }
  func.func @transform_10(%arg0: i32) -> (i32, i32, i32) {
    %c0_i32 = arith.constant 0 : i32
    %c0_i32_0 = arith.constant 0 : i32
    %c0_i32_1 = arith.constant 0 : i32
    return %arg0, %c0_i32, %c0_i32_0 : i32, i32, i32
  }
}

</mosaic_0001>

<llo_original>
// kernel: up_forward.1
$region0: #{up_forward.1}
  #allocation0 [shape = 'u32[]', space=smem, size = 0x4, offset = 0x4, fixed_abs, tag = 'smem constant byte address 0x4 - core index']
  #allocation1 [shape = 'u32[144,128]{1,0:T(1,128)}', space=vmem, size = 0x12000, scoped, tag = 'internal scratch']
  #allocation2 [shape = 'f32[8,512]{1,0:T(8,128)}', space=vmem, size = 0x4000, scoped, tag = 'scratch operand']
  #allocation3 [shape = 'f32[8,512]{1,0:T(8,128)}', space=vmem, size = 0x4000, scoped, tag = 'scratch operand']
  %s0 = inlined_call_operand.vmem [shape: f32[2,4,64], index: 0, kind: input, shape index: {}]
  %s1 = inlined_call_operand.vmem [shape: f32[2,4,256], index: 1, kind: input, shape index: {}]
  %s2 = inlined_call_operand.vmem [shape: f32[64,256], index: 2, kind: input, shape index: {}]
  %s3 = inlined_call_operand.vmem [shape: f32[9,256], index: 3, kind: input, shape index: {}]
  %s4 = inlined_call_operand.vmem [shape: f32[8,72], index: 4, kind: input, shape index: {}]
  %s5 = inlined_call_operand.vmem [shape: f32[8,1], index: 5, kind: input, shape index: {}]
  %s6 = inlined_call_operand.vmem [shape: f32[8,1], index: 6, kind: input, shape index: {}]
  %s7 = inlined_call_operand.vmem [shape: f32[8,72], index: 7, kind: input, shape index: {}]
  %s8 = inlined_call_operand.vmem [shape: f32[8,1], index: 8, kind: input, shape index: {}]
  %s9 = inlined_call_operand.vmem [shape: f32[8,1], index: 9, kind: input, shape index: {}]
  %s10 = inlined_call_operand.vmem [shape: f32[2,8,256], index: 10, kind: output, shape index: {}]
  %s11 = sld [smem:[#allocation0]]
  $region73: #{up_forward.1} parent=0
    _
  %s13 = ssub.s32 1, %s11
  %s14 = scalar_select 0, %s13, %s11
  loop: start=0, step=1, limit=4
  $region2: #{up_forward.1} parent=0 // loop_pre_header
    _
  $region3: #{up_forward.1} parent=0 // loop_header
    %s16 = sphi 0, %s20
    %p17 = scmp.ge.s32.totalorder %s16, 4
    %s26 = sphi 0, %s28
    %s29 = sphi 0, %s26
    %s30 = sphi 0, %s29
    %s46 = sphi 0, %s30
    %s52 = sphi 0, %s54
    %s55 = sphi 0, %s52
    %s56 = sphi 0, %s55
    %s72 = sphi 0, %s56
    %s76 = sphi 0, %s76
    %s78 = sphi 0, %s76
    %s79 = sphi 0, %s78
    %s93 = sphi 0, %s79
    %s97 = sphi 0, %s97
    %s99 = sphi 0, %s97
    %s100 = sphi 0, %s99
    %s114 = sphi 0, %s100
    %s118 = sphi 0, %s118
    %s120 = sphi 0, %s118
    %s121 = sphi 0, %s120
    %s135 = sphi 0, %s121
    %s139 = sphi 0, %s139
    %s141 = sphi 0, %s139
    %s142 = sphi 0, %s141
    %s156 = sphi 0, %s142
    %s160 = sphi 0, %s160
    %s162 = sphi 0, %s160
    %s163 = sphi 0, %s162
    %s177 = sphi 0, %s163
    %s181 = sphi 0, %s181
    %s183 = sphi 0, %s181
    %s184 = sphi 0, %s183
    %s198 = sphi 0, %s184
    %s202 = sphi 0, %s202
    %s204 = sphi 0, %s202
    %s205 = sphi 0, %s204
    %s219 = sphi 0, %s205
    %s223 = sphi 0, %s223
    %s225 = sphi 0, %s223
    %s226 = sphi 0, %s225
    %s240 = sphi 0, %s226
    %s246 = sphi 0, %s248
    %s249 = sphi 0, %s246
    %s250 = sphi 0, %s249
    %s266 = sphi 0, %s250
  $region4: #{up_forward.1} parent=0 // loop_header_branch
    %19 = sbr.rel (%p17) target = $region8
  $region5: #{up_forward.1} parent=0 // loop_body
    %s21 = ssub.s32 %s16, 1
    %s22 = ssub.s32 %s16, 2
    %s23 = sadd.s32 %s16, 1
    %s24 = ssub.s32 %s16, %s23
    %p25 = scmp.eq.s32.totalorder %s24, 0
    %s27 = sadd.s32 %s26, 1
    %s28 = scalar_select %p25, %s26, %s27
    %p31 = pneg %p25
    %p32 = scmp.eq.s32.totalorder %s16, 1
    %p33 = por %p31, %p32
    %p34 = scmp.ne.s32.totalorder %s26, %s29
    %p35 = scmp.eq.s32.totalorder %s16, 0
    %p36 = por %p34, %p35
    %p37 = scmp.ne.s32.totalorder %s26, %s29
    %p38 = scmp.eq.s32.totalorder %s21, 1
    %p39 = por %p37, %p38
    %p40 = scmp.ne.s32.totalorder %s29, %s30
    %p41 = scmp.eq.s32.totalorder %s21, 0
    %p42 = por %p40, %p41
    %p43 = scmp.ne.s32.totalorder %s29, %s30
    %p44 = scmp.eq.s32.totalorder %s22, 1
    %p45 = por %p43, %p44
    %p47 = scmp.ne.s32.totalorder %s30, %s46
    %p48 = scmp.eq.s32.totalorder %s22, 0
    %p49 = por %p47, %p48
    %s50 = ssub.s32 %s16, %s23
    %p51 = scmp.eq.s32.totalorder %s50, 0
    %s53 = sadd.s32 %s52, 1
    %s54 = scalar_select %p51, %s52, %s53
    %p57 = pneg %p51
    %p58 = scmp.eq.s32.totalorder %s16, 1
    %p59 = por %p57, %p58
    %p60 = scmp.ne.s32.totalorder %s52, %s55
    %p61 = scmp.eq.s32.totalorder %s16, 0
    %p62 = por %p60, %p61
    %p63 = scmp.ne.s32.totalorder %s52, %s55
    %p64 = scmp.eq.s32.totalorder %s21, 1
    %p65 = por %p63, %p64
    %p66 = scmp.ne.s32.totalorder %s55, %s56
    %p67 = scmp.eq.s32.totalorder %s21, 0
    %p68 = por %p66, %p67
    %p69 = scmp.ne.s32.totalorder %s55, %s56
    %p70 = scmp.eq.s32.totalorder %s22, 1
    %p71 = por %p69, %p70
    %p73 = scmp.ne.s32.totalorder %s56, %s72
    %p74 = scmp.eq.s32.totalorder %s22, 0
    %p75 = por %p73, %p74
    %s77 = sadd.s32 %s76, 1
    %p80 = scmp.eq.s32.totalorder %s16, 1
    %p81 = scmp.ne.s32.totalorder %s76, %s78
    %p82 = scmp.eq.s32.totalorder %s16, 0
    %p83 = por %p81, %p82
    %p84 = scmp.ne.s32.totalorder %s76, %s78
    %p85 = scmp.eq.s32.totalorder %s21, 1
    %p86 = por %p84, %p85
    %p87 = scmp.ne.s32.totalorder %s78, %s79
    %p88 = scmp.eq.s32.totalorder %s21, 0
    %p89 = por %p87, %p88
    %p90 = scmp.ne.s32.totalorder %s78, %s79
    %p91 = scmp.eq.s32.totalorder %s22, 1
    %p92 = por %p90, %p91
    %p94 = scmp.ne.s32.totalorder %s79, %s93
    %p95 = scmp.eq.s32.totalorder %s22, 0
    %p96 = por %p94, %p95
    %s98 = sadd.s32 %s97, 1
    %p101 = scmp.eq.s32.totalorder %s16, 1
    %p102 = scmp.ne.s32.totalorder %s97, %s99
    %p103 = scmp.eq.s32.totalorder %s16, 0
    %p104 = por %p102, %p103
    %p105 = scmp.ne.s32.totalorder %s97, %s99
    %p106 = scmp.eq.s32.totalorder %s21, 1
    %p107 = por %p105, %p106
    %p108 = scmp.ne.s32.totalorder %s99, %s100
    %p109 = scmp.eq.s32.totalorder %s21, 0
    %p110 = por %p108, %p109
    %p111 = scmp.ne.s32.totalorder %s99, %s100
    %p112 = scmp.eq.s32.totalorder %s22, 1
    %p113 = por %p111, %p112
    %p115 = scmp.ne.s32.totalorder %s100, %s114
    %p116 = scmp.eq.s32.totalorder %s22, 0
    %p117 = por %p115, %p116
    %s119 = sadd.s32 %s118, 1
    %p122 = scmp.eq.s32.totalorder %s16, 1
    %p123 = scmp.ne.s32.totalorder %s118, %s120
    %p124 = scmp.eq.s32.totalorder %s16, 0
    %p125 = por %p123, %p124
    %p126 = scmp.ne.s32.totalorder %s118, %s120
    %p127 = scmp.eq.s32.totalorder %s21, 1
    %p128 = por %p126, %p127
    %p129 = scmp.ne.s32.totalorder %s120, %s121
    %p130 = scmp.eq.s32.totalorder %s21, 0
    %p131 = por %p129, %p130
    %p132 = scmp.ne.s32.totalorder %s120, %s121
    %p133 = scmp.eq.s32.totalorder %s22, 1
    %p134 = por %p132, %p133
    %p136 = scmp.ne.s32.totalorder %s121, %s135
    %p137 = scmp.eq.s32.totalorder %s22, 0
    %p138 = por %p136, %p137
    %s140 = sadd.s32 %s139, 1
    %p143 = scmp.eq.s32.totalorder %s16, 1
    %p144 = scmp.ne.s32.totalorder %s139, %s141
    %p145 = scmp.eq.s32.totalorder %s16, 0
    %p146 = por %p144, %p145
    %p147 = scmp.ne.s32.totalorder %s139, %s141
    %p148 = scmp.eq.s32.totalorder %s21, 1
    %p149 = por %p147, %p148
    %p150 = scmp.ne.s32.totalorder %s141, %s142
    %p151 = scmp.eq.s32.totalorder %s21, 0
    %p152 = por %p150, %p151
    %p153 = scmp.ne.s32.totalorder %s141, %s142
    %p154 = scmp.eq.s32.totalorder %s22, 1
    %p155 = por %p153, %p154
    %p157 = scmp.ne.s32.totalorder %s142, %s156
    %p158 = scmp.eq.s32.totalorder %s22, 0
    %p159 = por %p157, %p158
    %s161 = sadd.s32 %s160, 1
    %p164 = scmp.eq.s32.totalorder %s16, 1
    %p165 = scmp.ne.s32.totalorder %s160, %s162
    %p166 = scmp.eq.s32.totalorder %s16, 0
    %p167 = por %p165, %p166
    %p168 = scmp.ne.s32.totalorder %s160, %s162
    %p169 = scmp.eq.s32.totalorder %s21, 1
    %p170 = por %p168, %p169
    %p171 = scmp.ne.s32.totalorder %s162, %s163
    %p172 = scmp.eq.s32.totalorder %s21, 0
    %p173 = por %p171, %p172
    %p174 = scmp.ne.s32.totalorder %s162, %s163
    %p175 = scmp.eq.s32.totalorder %s22, 1
    %p176 = por %p174, %p175
    %p178 = scmp.ne.s32.totalorder %s163, %s177
    %p179 = scmp.eq.s32.totalorder %s22, 0
    %p180 = por %p178, %p179
    %s182 = sadd.s32 %s181, 1
    %p185 = scmp.eq.s32.totalorder %s16, 1
    %p186 = scmp.ne.s32.totalorder %s181, %s183
    %p187 = scmp.eq.s32.totalorder %s16, 0
    %p188 = por %p186, %p187
    %p189 = scmp.ne.s32.totalorder %s181, %s183
    %p190 = scmp.eq.s32.totalorder %s21, 1
    %p191 = por %p189, %p190
    %p192 = scmp.ne.s32.totalorder %s183, %s184
    %p193 = scmp.eq.s32.totalorder %s21, 0
    %p194 = por %p192, %p193
    %p195 = scmp.ne.s32.totalorder %s183, %s184
    %p196 = scmp.eq.s32.totalorder %s22, 1
    %p197 = por %p195, %p196
    %p199 = scmp.ne.s32.totalorder %s184, %s198
    %p200 = scmp.eq.s32.totalorder %s22, 0
    %p201 = por %p199, %p200
    %s203 = sadd.s32 %s202, 1
    %p206 = scmp.eq.s32.totalorder %s16, 1
    %p207 = scmp.ne.s32.totalorder %s202, %s204
    %p208 = scmp.eq.s32.totalorder %s16, 0
    %p209 = por %p207, %p208
    %p210 = scmp.ne.s32.totalorder %s202, %s204
    %p211 = scmp.eq.s32.totalorder %s21, 1
    %p212 = por %p210, %p211
    %p213 = scmp.ne.s32.totalorder %s204, %s205
    %p214 = scmp.eq.s32.totalorder %s21, 0
    %p215 = por %p213, %p214
    %p216 = scmp.ne.s32.totalorder %s204, %s205
    %p217 = scmp.eq.s32.totalorder %s22, 1
    %p218 = por %p216, %p217
    %p220 = scmp.ne.s32.totalorder %s205, %s219
    %p221 = scmp.eq.s32.totalorder %s22, 0
    %p222 = por %p220, %p221
    %s224 = sadd.s32 %s223, 1
    %p227 = scmp.eq.s32.totalorder %s16, 1
    %p228 = scmp.ne.s32.totalorder %s223, %s225
    %p229 = scmp.eq.s32.totalorder %s16, 0
    %p230 = por %p228, %p229
    %p231 = scmp.ne.s32.totalorder %s223, %s225
    %p232 = scmp.eq.s32.totalorder %s21, 1
    %p233 = por %p231, %p232
    %p234 = scmp.ne.s32.totalorder %s225, %s226
    %p235 = scmp.eq.s32.totalorder %s21, 0
    %p236 = por %p234, %p235
    %p237 = scmp.ne.s32.totalorder %s225, %s226
    %p238 = scmp.eq.s32.totalorder %s22, 1
    %p239 = por %p237, %p238
    %p241 = scmp.ne.s32.totalorder %s226, %s240
    %p242 = scmp.eq.s32.totalorder %s22, 0
    %p243 = por %p241, %p242
    %s244 = ssub.s32 %s16, %s23
    %p245 = scmp.eq.s32.totalorder %s244, 0
    %s247 = sadd.s32 %s246, 1
    %s248 = scalar_select %p245, %s246, %s247
    %p251 = pneg %p245
    %p252 = scmp.eq.s32.totalorder %s16, 1
    %p253 = por %p251, %p252
    %p254 = scmp.ne.s32.totalorder %s246, %s249
    %p255 = scmp.eq.s32.totalorder %s16, 0
    %p256 = por %p254, %p255
    %p257 = scmp.ne.s32.totalorder %s246, %s249
    %p258 = scmp.eq.s32.totalorder %s21, 1
    %p259 = por %p257, %p258
    %p260 = scmp.ne.s32.totalorder %s249, %s250
    %p261 = scmp.eq.s32.totalorder %s21, 0
    %p262 = por %p260, %p261
    %p263 = scmp.ne.s32.totalorder %s249, %s250
    %p264 = scmp.eq.s32.totalorder %s22, 1
    %p265 = por %p263, %p264
    %p267 = scmp.ne.s32.totalorder %s250, %s266
    %p268 = scmp.eq.s32.totalorder %s22, 0
    %p269 = por %p267, %p268
    %p270 = scmp.le.s32.totalorder 1, %s16
    %p271 = scmp.lt.s32.totalorder %s16, 3
    %p272 = pnand %p270, %p271
    %p273 = pneg %p272
    // Predicated region
    $region9: #{up_forward.1} parent=5 // pred_check
      _
    $region10: #{up_forward.1} parent=5 // pred_check_branch
      %275 = sbr.rel (%p272) target = $region12
    $region11: #{up_forward.1} parent=5 // pred_region
      %s276 = ssub.s32 %s16, 1
      // Predicated region
      $region13: #{up_forward.1} parent=11 // pred_check
        %p277 = pneg %p89
      $region14: #{up_forward.1} parent=11 // pred_check_branch
        %279 = sbr.rel (%p277) target = $region16
      $region15: #{up_forward.1} parent=11 // pred_region
        _
      $region16: #{up_forward.1} parent=11 // pred_fallthru
        _
      // Predicated region
      $region17: #{up_forward.1} parent=11 // pred_check
        %p280 = pneg %p110
      $region18: #{up_forward.1} parent=11 // pred_check_branch
        %282 = sbr.rel (%p280) target = $region20
      $region19: #{up_forward.1} parent=11 // pred_region
        _
      $region20: #{up_forward.1} parent=11 // pred_fallthru
        _
      // Predicated region
      $region21: #{up_forward.1} parent=11 // pred_check
        %p283 = pneg %p131
      $region22: #{up_forward.1} parent=11 // pred_check_branch
        %285 = sbr.rel (%p283) target = $region24
      $region23: #{up_forward.1} parent=11 // pred_region
        _
      $region24: #{up_forward.1} parent=11 // pred_fallthru
        _
      // Predicated region
      $region25: #{up_forward.1} parent=11 // pred_check
        %p286 = pneg %p152
      $region26: #{up_forward.1} parent=11 // pred_check_branch
        %288 = sbr.rel (%p286) target = $region28
      $region27: #{up_forward.1} parent=11 // pred_region
        _
      $region28: #{up_forward.1} parent=11 // pred_fallthru
        _
      // Predicated region
      $region29: #{up_forward.1} parent=11 // pred_check
        %p289 = pneg %p173
      $region30: #{up_forward.1} parent=11 // pred_check_branch
        %291 = sbr.rel (%p289) target = $region32
      $region31: #{up_forward.1} parent=11 // pred_region
        _
      $region32: #{up_forward.1} parent=11 // pred_fallthru
        _
      // Predicated region
      $region33: #{up_forward.1} parent=11 // pred_check
        %p292 = pneg %p194
      $region34: #{up_forward.1} parent=11 // pred_check_branch
        %294 = sbr.rel (%p292) target = $region36
      $region35: #{up_forward.1} parent=11 // pred_region
        _
      $region36: #{up_forward.1} parent=11 // pred_fallthru
        _
      // Predicated region
      $region37: #{up_forward.1} parent=11 // pred_check
        %p295 = pneg %p215
      $region38: #{up_forward.1} parent=11 // pred_check_branch
        %297 = sbr.rel (%p295) target = $region40
      $region39: #{up_forward.1} parent=11 // pred_region
        _
      $region40: #{up_forward.1} parent=11 // pred_fallthru
        _
      // Predicated region
      $region41: #{up_forward.1} parent=11 // pred_check
        %p298 = pneg %p236
      $region42: #{up_forward.1} parent=11 // pred_check_branch
        %300 = sbr.rel (%p298) target = $region44
      $region43: #{up_forward.1} parent=11 // pred_region
        _
      $region44: #{up_forward.1} parent=11 // pred_fallthru
        _
    $region12: #{up_forward.1} parent=5 // pred_fallthru
      _
    %p301 = scmp.lt.s32.totalorder %s16, 2
    // Predicated region
    $region45: #{up_forward.1} parent=5 // pred_check
      %p302 = pneg %p301
    $region46: #{up_forward.1} parent=5 // pred_check_branch
      %304 = sbr.rel (%p302) target = $region48
    $region47: #{up_forward.1} parent=5 // pred_region
      // Predicated region
      $region49: #{up_forward.1} parent=47 // pred_check
        %p305 = pneg %p36
      $region50: #{up_forward.1} parent=47 // pred_check_branch
        %307 = sbr.rel (%p305) target = $region52
      $region51: #{up_forward.1} parent=47 // pred_region
        %p308 = scmp.lt.s32.totalorder %s16, 1
        %s309 = scalar_select %p308, %s16, 1
        %s310 = smul.addr %s309, 4
        %s311 = scalar_lea.vmem %s0, %s310
      $region52: #{up_forward.1} parent=47 // pred_fallthru
        _
      // Predicated region
      $region53: #{up_forward.1} parent=47 // pred_check
        %p312 = pneg %p62
      $region54: #{up_forward.1} parent=47 // pred_check_branch
        %314 = sbr.rel (%p312) target = $region56
      $region55: #{up_forward.1} parent=47 // pred_region
        %p315 = scmp.lt.s32.totalorder %s16, 1
        %s316 = scalar_select %p315, %s16, 1
        %s317 = smul.addr %s316, 2
        %s318 = smul.addr %s317, 4
        %s319 = scalar_lea.vmem %s1, %s318
      $region56: #{up_forward.1} parent=47 // pred_fallthru
        _
    $region48: #{up_forward.1} parent=5 // pred_fallthru
      _
    %p320 = scmp.le.s32.totalorder 1, %s16
    %p321 = scmp.lt.s32.totalorder %s16, 3
    %p322 = pnand %p320, %p321
    %p323 = pneg %p322
    // Predicated region
    $region57: #{up_forward.1} parent=5 // pred_check
      _
    $region58: #{up_forward.1} parent=5 // pred_check_branch
      %325 = sbr.rel (%p322) target = $region60
    $region59: #{up_forward.1} parent=5 // pred_region
      %s326 = ssub.s32 %s16, 1
      %p327 = scmp.lt.s32.totalorder %s21, 1
      %s328 = scalar_select %p327, %s21, 1
      %s329 = smul.addr %s328, 4
      %s330 = scalar_lea.vmem %s0, %s329
      %p331 = pneg %p42
      %p332 = pneg %p39
      %p333 = scmp.lt.s32.totalorder %s21, 1
      %s334 = scalar_select %p333, %s21, 1
      %s335 = smul.addr %s334, 2
      %s336 = smul.addr %s335, 4
      %s337 = scalar_lea.vmem %s1, %s336
      %p338 = pneg %p68
      %p339 = pneg %p65
      %p340 = pneg %p89
      %p341 = pneg %p86
      %p342 = pneg %p110
      %p343 = pneg %p107
      %p344 = pneg %p131
      %p345 = pneg %p128
      %p346 = pneg %p152
      %p347 = pneg %p149
      %p348 = pneg %p173
      %p349 = pneg %p170
      %p350 = pneg %p194
      %p351 = pneg %p191
      %p352 = pneg %p215
      %p353 = pneg %p212
      %p354 = pneg %p236
      %p355 = pneg %p233
      %p356 = pneg %p262
      %p357 = pneg %p259
      %p358 = scmp.lt.s32.totalorder %s21, 1
      %s359 = scalar_select %p358, %s21, 1
      %s360 = smul.addr %s359, 2
      %s361 = smul.addr %s360, 8
      %s362 = scalar_lea.vmem %s10, %s361
      %p363 = scmp.lt.s32.totalorder %s21, 1
      %s364 = scalar_select %p363, %s21, 1
      %s365 = smul.addr %s364, 4
      %s366 = scalar_lea.vmem %s0, %s365
      %p367 = scmp.lt.s32.totalorder %s21, 1
      %s368 = scalar_select %p367, %s21, 1
      %s369 = smul.addr %s368, 2
      %s370 = smul.addr %s369, 4
      %s371 = scalar_lea.vmem %s1, %s370
      %p372 = scmp.lt.s32.totalorder %s21, 1
      %s373 = scalar_select %p372, %s21, 1
      %s374 = smul.addr %s373, 2
      %s375 = smul.addr %s374, 8
      %s376 = scalar_lea.vmem %s10, %s375
      %377 = vst [vmem:[#allocation2] sm:$0xff] 0.0
      %378 = vst [vmem:[#allocation2 + $0x18] sm:$0xff] 0.0
      %379 = vst [vmem:[#allocation3] sm:$0xff] 0.0
      %380 = vst [vmem:[#allocation3 + $0x18] sm:$0xff] 0.0
      %v381 = vld [vmem:[%s371] sm:$0xff]
      %v383 = vcombine.high %v381, %v381
      %385 = vst [vmem:[#allocation2 + $0x8] sm:$0xf] %v381
      %386 = vst [vmem:[#allocation2 + $0x10] sm:$0xf] %v383
      %v387 = vld [vmem:[%s366] sm:$0xf]
      %v388 = vld [vmem:[%s2] sm:$0xff]
      %v389 = vld [vmem:[%s2 + $0x8] sm:$0xff]
      %v390 = vld [vmem:[%s2 + $0x10] sm:$0xff]
      %v391 = vld [vmem:[%s2 + $0x18] sm:$0xff]
      %v392 = vld [vmem:[%s2 + $0x20] sm:$0xff]
      %v393 = vld [vmem:[%s2 + $0x28] sm:$0xff]
      %v394 = vld [vmem:[%s2 + $0x30] sm:$0xff]
      %v395 = vld [vmem:[%s2 + $0x38] sm:$0xff]
      %v396 = vld [vmem:[%s2 + $0x40] sm:$0xff]
      %v397 = vld [vmem:[%s2 + $0x48] sm:$0xff]
      %v398 = vld [vmem:[%s2 + $0x50] sm:$0xff]
      %v399 = vld [vmem:[%s2 + $0x58] sm:$0xff]
      %v400 = vld [vmem:[%s2 + $0x60] sm:$0xff]
      %v401 = vld [vmem:[%s2 + $0x68] sm:$0xff]
      %v402 = vld [vmem:[%s2 + $0x70] sm:$0xff]
      %v403 = vld [vmem:[%s2 + $0x78] sm:$0xff]
      %vm404 = vcmask 523264
      %v406 = vsel %vm404, %v387, 0
      %408 = vmatprep.subr.mxu0 %v389
      %409 = vmatpush1.msra.mxu0 %v388
      %410 = vmatprep.subr.mxu0 %v391
      %411 = vmatpush1.msra.mxu0 %v390
      %412 = vmatprep.subr.mxu0 %v393
      %413 = vmatpush1.msra.mxu0 %v392
      %414 = vmatprep.subr.mxu0 %v395
      %415 = vmatpush1.msra.mxu0 %v394
      %416 = vmatprep.subr.mxu0 %v397
      %417 = vmatpush1.msra.mxu0 %v396
      %418 = vmatprep.subr.mxu0 %v399
      %419 = vmatpush1.msra.mxu0 %v398
      %420 = vmatprep.subr.mxu0 %v401
      %421 = vmatpush1.msra.mxu0 %v400
      %422 = vmatprep.subr.mxu0 %v403
      %423 = vmatpush1.msra.mxu0 %v402
      %424 = vmatprep.subr.mxu0 0.0
      %425 = vmatpush1.msra.mxu0 0.0
      %426 = vmatprep.subr.mxu0 0.0
      %427 = vmatpush1.msra.mxu0 0.0
      %428 = vmatprep.subr.mxu0 0.0
      %429 = vmatpush1.msra.mxu0 0.0
      %430 = vmatprep.subr.mxu0 0.0
      %431 = vmatpush1.msra.mxu0 0.0
      %432 = vmatprep.subr.mxu0 0.0
      %433 = vmatpush1.msra.mxu0 0.0
      %434 = vmatprep.subr.mxu0 0.0
      %435 = vmatpush1.msra.mxu0 0.0
      %436 = vmatprep.subr.mxu0 0.0
      %437 = vmatpush1.msra.mxu0 0.0
      %438 = vmatprep.subr.mxu0 0.0
      %439 = vmatpush1.msra.mxu0 0.0
      %440 = vmatprep.subr.mxu0 0.0
      %441 = vmatpush1.msra.mxu0 0.0
      %442 = vmatprep.subr.mxu0 0.0
      %443 = vmatpush1.msra.mxu0 0.0
      %444 = vmatprep.subr.mxu0 0.0
      %445 = vmatpush1.msra.mxu0 0.0
      %446 = vmatprep.subr.mxu0 0.0
      %447 = vmatpush1.msra.mxu0 0.0
      %448 = vmatprep.subr.mxu0 0.0
      %449 = vmatpush1.msra.mxu0 0.0
      %450 = vmatprep.subr.mxu0 0.0
      %451 = vmatpush1.msra.mxu0 0.0
      %452 = vmatprep.subr.mxu0 0.0
      %453 = vmatpush1.msra.mxu0 0.0
      %454 = vmatprep.subr.mxu0 0.0
      %455 = vmatpush1.msra.mxu0 0.0
      %456 = vmatprep.subr.mxu0 0.0
      %457 = vmatpush1.msra.mxu0 0.0
      %458 = vmatprep.subr.mxu0 0.0
      %459 = vmatpush1.msra.mxu0 0.0
      %460 = vmatprep.subr.mxu0 0.0
      %461 = vmatpush1.msra.mxu0 0.0
      %462 = vmatprep.subr.mxu0 0.0
      %463 = vmatpush1.msra.mxu0 0.0
      %464 = vmatprep.subr.mxu0 0.0
      %465 = vmatpush1.msra.mxu0 0.0
      %466 = vmatprep.subr.mxu0 0.0
      %467 = vmatpush1.msra.mxu0 0.0
      %468 = vmatprep.subr.mxu0 0.0
      %469 = vmatpush1.msra.mxu0 0.0
      %470 = vmatprep.subr.mxu0 0.0
      %471 = vmatpush1.msra.mxu0 0.0
      %472 = vmatprep.mubr.f32.mxu0 0.0
      %473 = vmatmul.mubr.f32.gmra.mrb[0].mxu0 %v406
      %v474 = vpop.f32.mrb[0].mxu0
      %v475 = vadd.f32 0.0, %v474
      %v476 = vpop.f32.mrb[0].mxu0
      %v477 = vadd.f32 0.0, %v476
      %478 = vdwg.mxu0
      %v481 = vrot.slane %v475, 4
      %v482 = vrot.slane %v477, 4
      %485 = vst [vmem:[#allocation2 + $0x8] sm:$0xf0] %v481
      %486 = vst [vmem:[#allocation2 + $0x10] sm:$0xf0] %v482
      %v487 = vld [vmem:[#allocation2] sm:$0xff]
      %v488 = vld [vmem:[#allocation2 + $0x8] sm:$0xff]
      %v489 = vld [vmem:[#allocation2 + $0x10] sm:$0xff]
      %v490 = vld [vmem:[%s3] ss:$8 sm:$0x3]
      %v492 = vlaneseq
      %v493 = vshrl.u32 %v492, 7
      %v494 = vsub.s32 0, %v493
      %v495 = vrot.slane %v490, %v494
      %v496 = vlaneseq
      %v497 = vshrl.u32 %v496, 7
      %v498 = vsub.s32 1, %v497
      %v499 = vrot.slane %v490, %v498
      %500 = vrot.lane.b32.xlu0 %v495, 111
      %v501 = vpop.permute.xlu0 %500
      %502 = vrot.lane.b32.xlu0 %v499, 111
      %v503 = vpop.permute.xlu0 %502
      %vm504 = vcmask 908288
      %v505 = vsel %vm504, %v501, %v503
      %v509 = vmul.f32 %v487, %v501
      %v510 = vmul.f32 %v488, %v505
      %v511 = vmul.f32 %v489, %v503
      %s512 = scalar_lea.vmem %s3, 2
      %v513 = vld [vmem:[%s512] ss:$8 sm:$0x3]
      %v515 = vlaneseq
      %v516 = vshrl.u32 %v515, 7
      %v517 = vsub.s32 0, %v516
      %v518 = vrot.slane %v513, %v517
      %v519 = vlaneseq
      %v520 = vshrl.u32 %v519, 7
      %v521 = vsub.s32 1, %v520
      %v522 = vrot.slane %v513, %v521
      %523 = vrot.lane.b32.xlu0 %v518, 113
      %v524 = vpop.permute.xlu0 %523
      %525 = vrot.lane.b32.xlu0 %v522, 113
      %v526 = vpop.permute.xlu0 %525
      %vm527 = vcmask 924672
      %v528 = vsel %vm527, %v524, %v526
      %v532 = vmul.f32 %v487, %v524
      %v533 = vmul.f32 %v488, %v528
      %v534 = vmul.f32 %v489, %v526
      %s535 = scalar_lea.vmem %s3, 3
      %v536 = vld [vmem:[%s535] ss:$8 sm:$0x3]
      %v538 = vlaneseq
      %v539 = vshrl.u32 %v538, 7
      %v540 = vsub.s32 0, %v539
      %v541 = vrot.slane %v536, %v540
      %v542 = vlaneseq
      %v543 = vshrl.u32 %v542, 7
      %v544 = vsub.s32 1, %v543
      %v545 = vrot.slane %v536, %v544
      %546 = vrot.lane.b32.xlu0 %v541, 127
      %v547 = vpop.permute.xlu0 %546
      %548 = vrot.lane.b32.xlu0 %v545, 127
      %v549 = vpop.permute.xlu0 %548
      %vm550 = vcmask 1039360
      %v551 = vsel %vm550, %v547, %v549
      %v555 = vmul.f32 %v487, %v547
      %v556 = vmul.f32 %v488, %v551
      %v557 = vmul.f32 %v489, %v549
      %v558 = vld [vmem:[#allocation2 + $0x8] sm:$0xff]
      %v559 = vld [vmem:[#allocation2 + $0x10] sm:$0xff]
      %v560 = vld [vmem:[#allocation2 + $0x18] sm:$0xff]
      %s561 = scalar_lea.vmem %s3, 5
      %v562 = vld [vmem:[%s561] ss:$8 sm:$0x3]
      %v564 = vlaneseq
      %v565 = vshrl.u32 %v564, 7
      %v566 = vsub.s32 0, %v565
      %v567 = vrot.slane %v562, %v566
      %v568 = vlaneseq
      %v569 = vshrl.u32 %v568, 7
      %v570 = vsub.s32 1, %v569
      %v571 = vrot.slane %v562, %v570
      %572 = vrot.lane.b32.xlu0 %v567, 1
      %v573 = vpop.permute.xlu0 %572
      %574 = vrot.lane.b32.xlu0 %v571, 1
      %v575 = vpop.permute.xlu0 %574
      %vm576 = vcmask 7168
      %v577 = vsel %vm576, %v573, %v575
      %v581 = vmul.f32 %v558, %v573
      %v582 = vmul.f32 %v559, %v577
      %v583 = vmul.f32 %v560, %v575
      %s584 = scalar_lea.vmem %s3, 6
      %v585 = vld [vmem:[%s584] ss:$8 sm:$0x3]
      %v587 = vlaneseq
      %v588 = vshrl.u32 %v587, 7
      %v589 = vsub.s32 0, %v588
      %v590 = vrot.slane %v585, %v589
      %v591 = vlaneseq
      %v592 = vshrl.u32 %v591, 7
      %v593 = vsub.s32 1, %v592
      %v594 = vrot.slane %v585, %v593
      %595 = vrot.lane.b32.xlu0 %v590, 15
      %v596 = vpop.permute.xlu0 %595
      %597 = vrot.lane.b32.xlu0 %v594, 15
      %v598 = vpop.permute.xlu0 %597
      %vm599 = vcmask 121856
      %v600 = vsel %vm599, %v596, %v598
      %v604 = vmul.f32 %v558, %v596
      %v605 = vmul.f32 %v559, %v600
      %v606 = vmul.f32 %v560, %v598
      %s607 = scalar_lea.vmem %s3, 16
      %v608 = vld [vmem:[%s607] ss:$8 sm:$0x3]
      %v610 = vlaneseq
      %v611 = vshrl.u32 %v610, 7
      %v612 = vsub.s32 0, %v611
      %v613 = vrot.slane %v608, %v612
      %v614 = vlaneseq
      %v615 = vshrl.u32 %v614, 7
      %v616 = vsub.s32 1, %v615
      %v617 = vrot.slane %v608, %v616
      %618 = vrot.lane.b32.xlu0 %v613, 17
      %v619 = vpop.permute.xlu0 %618
      %620 = vrot.lane.b32.xlu0 %v617, 17
      %v621 = vpop.permute.xlu0 %620
      %vm622 = vcmask 138240
      %v623 = vsel %vm622, %v619, %v621
      %v627 = vmul.f32 %v558, %v619
      %v628 = vmul.f32 %v559, %v623
      %v629 = vmul.f32 %v560, %v621
      %633 = vrot.lane.b32.xlu0 %v487, 127
      %v634 = vpop.permute.xlu0 %633
      %635 = vrot.lane.b32.xlu0 %v488, 127
      %v636 = vpop.permute.xlu0 %635
      %637 = vrot.lane.b32.xlu0 %v489, 127
      %v638 = vpop.permute.xlu0 %637
      %v639 = vsel %vm550, %v634, %v636
      %v640 = vsel %vm550, %v636, %v638
      %644 = vrot.lane.b32.xlu0 %v532, 126
      %v645 = vpop.permute.xlu0 %644
      %646 = vrot.lane.b32.xlu0 %v533, 126
      %v647 = vpop.permute.xlu0 %646
      %648 = vrot.lane.b32.xlu0 %v534, 126
      %v649 = vpop.permute.xlu0 %648
      %vm650 = vcmask 1031168
      %v651 = vsel %vm650, %v645, %v647
      %v652 = vsel %vm650, %v647, %v649
      %656 = vrot.lane.b32.xlu0 %v555, 112
      %v657 = vpop.permute.xlu0 %656
      %658 = vrot.lane.b32.xlu0 %v556, 112
      %v659 = vpop.permute.xlu0 %658
      %660 = vrot.lane.b32.xlu0 %v557, 112
      %v661 = vpop.permute.xlu0 %660
      %vm662 = vcmask 916480
      %v663 = vsel %vm662, %v657, %v659
      %v664 = vsel %vm662, %v659, %v661
      %665 = vrot.lane.b32.xlu0 %v488, 111
      %v666 = vpop.permute.xlu0 %665
      %667 = vrot.lane.b32.xlu0 %v489, 111
      %v668 = vpop.permute.xlu0 %667
      %v669 = vsel %vm504, %v666, %v668
      %673 = vrot.lane.b32.xlu0 %v581, 110
      %v674 = vpop.permute.xlu0 %673
      %675 = vrot.lane.b32.xlu0 %v582, 110
      %v676 = vpop.permute.xlu0 %675
      %677 = vrot.lane.b32.xlu0 %v583, 110
      %v678 = vpop.permute.xlu0 %677
      %vm679 = vcmask 900096
      %v680 = vsel %vm679, %v674, %v676
      %v681 = vsel %vm679, %v676, %v678
      %685 = vrot.lane.b32.xlu0 %v604, 96
      %v686 = vpop.permute.xlu0 %685
      %687 = vrot.lane.b32.xlu0 %v605, 96
      %v688 = vpop.permute.xlu0 %687
      %689 = vrot.lane.b32.xlu0 %v606, 96
      %v690 = vpop.permute.xlu0 %689
      %vm691 = vcmask 785408
      %v692 = vsel %vm691, %v686, %v688
      %v693 = vsel %vm691, %v688, %v690
      %697 = vrot.lane.b32.xlu0 %v558, 95
      %v698 = vpop.permute.xlu0 %697
      %699 = vrot.lane.b32.xlu0 %v559, 95
      %v700 = vpop.permute.xlu0 %699
      %701 = vrot.lane.b32.xlu0 %v560, 95
      %v702 = vpop.permute.xlu0 %701
      %vm703 = vcmask 777216
      %v704 = vsel %vm703, %v698, %v700
      %v705 = vsel %vm703, %v700, %v702
      %709 = vrot.lane.b32.xlu0 %v627, 94
      %v710 = vpop.permute.xlu0 %709
      %711 = vrot.lane.b32.xlu0 %v628, 94
      %v712 = vpop.permute.xlu0 %711
      %713 = vrot.lane.b32.xlu0 %v629, 94
      %v714 = vpop.permute.xlu0 %713
      %vm715 = vcmask 769024
      %v716 = vsel %vm715, %v710, %v712
      %v717 = vsel %vm715, %v712, %v714
      %v718 = vld [vmem:[%s4] sm:$0xff]
      %722 = vrot.lane.b32.xlu0 %v509, 17
      %v723 = vpop.permute.xlu0 %722
      %724 = vrot.lane.b32.xlu0 %v510, 17
      %v725 = vpop.permute.xlu0 %724
      %726 = vrot.lane.b32.xlu0 %v511, 17
      %v727 = vpop.permute.xlu0 %726
      %728 = vrot.lane.b32.xlu0 %v639, 17
      %v729 = vpop.permute.xlu0 %728
      %730 = vrot.lane.b32.xlu0 %v640, 17
      %v731 = vpop.permute.xlu0 %730
      %732 = vrot.lane.b32.xlu0 %v638, 17
      %v733 = vpop.permute.xlu0 %732
      %734 = vrot.lane.b32.xlu0 %v651, 17
      %v735 = vpop.permute.xlu0 %734
      %736 = vrot.lane.b32.xlu0 %v652, 17
      %v737 = vpop.permute.xlu0 %736
      %738 = vrot.lane.b32.xlu0 %v649, 17
      %v739 = vpop.permute.xlu0 %738
      %740 = vrot.lane.b32.xlu0 %v663, 17
      %v741 = vpop.permute.xlu0 %740
      %742 = vrot.lane.b32.xlu0 %v664, 17
      %v743 = vpop.permute.xlu0 %742
      %744 = vrot.lane.b32.xlu0 %v661, 17
      %v745 = vpop.permute.xlu0 %744
      %746 = vrot.lane.b32.xlu0 %v666, 17
      %v747 = vpop.permute.xlu0 %746
      %748 = vrot.lane.b32.xlu0 %v669, 17
      %v749 = vpop.permute.xlu0 %748
      %750 = vrot.lane.b32.xlu0 %v668, 17
      %v751 = vpop.permute.xlu0 %750
      %752 = vrot.lane.b32.xlu0 %v674, 17
      %v753 = vpop.permute.xlu0 %752
      %754 = vrot.lane.b32.xlu0 %v680, 17
      %v755 = vpop.permute.xlu0 %754
      %756 = vrot.lane.b32.xlu0 %v681, 17
      %v757 = vpop.permute.xlu0 %756
      %758 = vrot.lane.b32.xlu0 %v686, 17
      %v759 = vpop.permute.xlu0 %758
      %760 = vrot.lane.b32.xlu0 %v692, 17
      %v761 = vpop.permute.xlu0 %760
      %762 = vrot.lane.b32.xlu0 %v693, 17
      %v763 = vpop.permute.xlu0 %762
      %764 = vrot.lane.b32.xlu0 %v698, 17
      %v765 = vpop.permute.xlu0 %764
      %766 = vrot.lane.b32.xlu0 %v704, 17
      %v767 = vpop.permute.xlu0 %766
      %768 = vrot.lane.b32.xlu0 %v705, 17
      %v769 = vpop.permute.xlu0 %768
      %770 = vrot.lane.b32.xlu0 %v710, 17
      %v771 = vpop.permute.xlu0 %770
      %772 = vrot.lane.b32.xlu0 %v716, 17
      %v773 = vpop.permute.xlu0 %772
      %774 = vrot.lane.b32.xlu0 %v717, 17
      %v775 = vpop.permute.xlu0 %774
      %v776 = vsel %vm622, %v723, %v725
      %v777 = vsel %vm622, %v725, %v727
      %v778 = vsel %vm622, %v729, %v731
      %v779 = vsel %vm622, %v731, %v733
      %v780 = vsel %vm622, %v735, %v737
      %v781 = vsel %vm622, %v737, %v739
      %v782 = vsel %vm622, %v741, %v743
      %v783 = vsel %vm622, %v743, %v745
      %v784 = vsel %vm622, %v747, %v749
      %v785 = vsel %vm622, %v749, %v751
      %v786 = vsel %vm622, %v753, %v755
      %v787 = vsel %vm622, %v755, %v757
      %v788 = vsel %vm622, %v759, %v761
      %v789 = vsel %vm622, %v761, %v763
      %v790 = vsel %vm622, %v765, %v767
      %v791 = vsel %vm622, %v767, %v769
      %v792 = vsel %vm622, %v771, %v773
      %v793 = vsel %vm622, %v773, %v775
      %vm812 = vcmask 588800
      %v814 = vsel %vm812, %v718, 0
      %816 = vmatprep.subr.mxu0 %v777
      %817 = vmatpush1.msra.mxu0 %v776
      %818 = vmatprep.subr.mxu0 %v779
      %819 = vmatpush1.msra.mxu0 %v778
      %820 = vmatprep.subr.mxu0 %v781
      %821 = vmatpush1.msra.mxu0 %v780
      %822 = vmatprep.subr.mxu0 %v783
      %823 = vmatpush1.msra.mxu0 %v782
      %824 = vmatprep.subr.mxu0 %v785
      %825 = vmatpush1.msra.mxu0 %v784
      %826 = vmatprep.subr.mxu0 %v787
      %827 = vmatpush1.msra.mxu0 %v786
      %828 = vmatprep.subr.mxu0 %v789
      %829 = vmatpush1.msra.mxu0 %v788
      %830 = vmatprep.subr.mxu0 %v791
      %831 = vmatpush1.msra.mxu0 %v790
      %832 = vmatprep.subr.mxu0 %v793
      %833 = vmatpush1.msra.mxu0 %v792
      %834 = vmatprep.subr.mxu0 0.0
      %835 = vmatpush1.msra.mxu0 0.0
      %836 = vmatprep.subr.mxu0 0.0
      %837 = vmatpush1.msra.mxu0 0.0
      %838 = vmatprep.subr.mxu0 0.0
      %839 = vmatpush1.msra.mxu0 0.0
      %840 = vmatprep.subr.mxu0 0.0
      %841 = vmatpush1.msra.mxu0 0.0
      %842 = vmatprep.subr.mxu0 0.0
      %843 = vmatpush1.msra.mxu0 0.0
      %844 = vmatprep.subr.mxu0 0.0
      %845 = vmatpush1.msra.mxu0 0.0
      %846 = vmatprep.subr.mxu0 0.0
      %847 = vmatpush1.msra.mxu0 0.0
      %848 = vmatprep.subr.mxu0 0.0
      %849 = vmatpush1.msra.mxu0 0.0
      %850 = vmatprep.subr.mxu0 0.0
      %851 = vmatpush1.msra.mxu0 0.0
      %852 = vmatprep.subr.mxu0 0.0
      %853 = vmatpush1.msra.mxu0 0.0
      %854 = vmatprep.subr.mxu0 0.0
      %855 = vmatpush1.msra.mxu0 0.0
      %856 = vmatprep.subr.mxu0 0.0
      %857 = vmatpush1.msra.mxu0 0.0
      %858 = vmatprep.subr.mxu0 0.0
      %859 = vmatpush1.msra.mxu0 0.0
      %860 = vmatprep.subr.mxu0 0.0
      %861 = vmatpush1.msra.mxu0 0.0
      %862 = vmatprep.subr.mxu0 0.0
      %863 = vmatpush1.msra.mxu0 0.0
      %864 = vmatprep.subr.mxu0 0.0
      %865 = vmatpush1.msra.mxu0 0.0
      %866 = vmatprep.subr.mxu0 0.0
      %867 = vmatpush1.msra.mxu0 0.0
      %868 = vmatprep.subr.mxu0 0.0
      %869 = vmatpush1.msra.mxu0 0.0
      %870 = vmatprep.subr.mxu0 0.0
      %871 = vmatpush1.msra.mxu0 0.0
      %872 = vmatprep.subr.mxu0 0.0
      %873 = vmatpush1.msra.mxu0 0.0
      %874 = vmatprep.subr.mxu0 0.0
      %875 = vmatpush1.msra.mxu0 0.0
      %876 = vmatprep.subr.mxu0 0.0
      %877 = vmatpush1.msra.mxu0 0.0
      %878 = vmatprep.subr.mxu0 0.0
      %879 = vmatpush1.msra.mxu0 0.0
      %880 = vmatprep.mubr.f32.mxu0 0.0
      %881 = vmatmul.mubr.f32.gmra.mrb[0].mxu0 %v814
      %v882 = vpop.f32.mrb[0].mxu0
      %v883 = vadd.f32 0.0, %v882
      %v884 = vpop.f32.mrb[0].mxu0
      %v885 = vadd.f32 0.0, %v884
      %886 = vdwg.mxu0
      %v887 = vld [vmem:[%s5] sm:$0xff]
      %889 = vset.pattern.permute.xlu0 0
      %890 = vperm.xlu0 %889, %v887
      %v891 = vpop.permute.xlu0 %890
      %v893 = vmul.f32 %v883, %v891
      %v894 = vmul.f32 %v885, %v891
      %v895 = vld [vmem:[%s6] sm:$0xff]
      %897 = vset.pattern.permute.xlu0 0
      %898 = vperm.xlu0 %897, %v895
      %v899 = vpop.permute.xlu0 %898
      %v901 = vadd.f32 %v893, %v899
      %v902 = vadd.f32 %v894, %v899
      %v903 = vmax.f32 %v901, 0.0
      %v904 = vmax.f32 %v902, 0.0
      %905 = vst [vmem:[#allocation3 + $0x8] sm:$0xff] %v903
      %906 = vst [vmem:[#allocation3 + $0x10] sm:$0xff] %v904
      %v907 = vld [vmem:[#allocation3] sm:$0xff]
      %v908 = vld [vmem:[#allocation3 + $0x8] sm:$0xff]
      %v909 = vld [vmem:[#allocation3 + $0x10] sm:$0xff]
      %v910 = vld [vmem:[%s3] ss:$8 sm:$0x3]
      %v912 = vlaneseq
      %v913 = vshrl.u32 %v912, 7
      %v914 = vsub.s32 0, %v913
      %v915 = vrot.slane %v910, %v914
      %v916 = vlaneseq
      %v917 = vshrl.u32 %v916, 7
      %v918 = vsub.s32 1, %v917
      %v919 = vrot.slane %v910, %v918
      %920 = vrot.lane.b32.xlu0 %v915, 111
      %v921 = vpop.permute.xlu0 %920
      %922 = vrot.lane.b32.xlu0 %v919, 111
      %v923 = vpop.permute.xlu0 %922
      %v924 = vsel %vm504, %v921, %v923
      %v928 = vmul.f32 %v907, %v921
      %v929 = vmul.f32 %v908, %v924
      %v930 = vmul.f32 %v909, %v923
      %v931 = vld [vmem:[%s512] ss:$8 sm:$0x3]
      %v933 = vlaneseq
      %v934 = vshrl.u32 %v933, 7
      %v935 = vsub.s32 0, %v934
      %v936 = vrot.slane %v931, %v935
      %v937 = vlaneseq
      %v938 = vshrl.u32 %v937, 7
      %v939 = vsub.s32 1, %v938
      %v940 = vrot.slane %v931, %v939
      %941 = vrot.lane.b32.xlu0 %v936, 113
      %v942 = vpop.permute.xlu0 %941
      %943 = vrot.lane.b32.xlu0 %v940, 113
      %v944 = vpop.permute.xlu0 %943
      %v945 = vsel %vm527, %v942, %v944
      %v949 = vmul.f32 %v907, %v942
      %v950 = vmul.f32 %v908, %v945
      %v951 = vmul.f32 %v909, %v944
      %v952 = vld [vmem:[%s535] ss:$8 sm:$0x3]
      %v954 = vlaneseq
      %v955 = vshrl.u32 %v954, 7
      %v956 = vsub.s32 0, %v955
      %v957 = vrot.slane %v952, %v956
      %v958 = vlaneseq
      %v959 = vshrl.u32 %v958, 7
      %v960 = vsub.s32 1, %v959
      %v961 = vrot.slane %v952, %v960
      %962 = vrot.lane.b32.xlu0 %v957, 127
      %v963 = vpop.permute.xlu0 %962
      %964 = vrot.lane.b32.xlu0 %v961, 127
      %v965 = vpop.permute.xlu0 %964
      %v966 = vsel %vm550, %v963, %v965
      %v970 = vmul.f32 %v907, %v963
      %v971 = vmul.f32 %v908, %v966
      %v972 = vmul.f32 %v909, %v965
      %v973 = vld [vmem:[#allocation3 + $0x8] sm:$0xff]
      %v974 = vld [vmem:[#allocation3 + $0x10] sm:$0xff]
      %v975 = vld [vmem:[#allocation3 + $0x18] sm:$0xff]
      %v976 = vld [vmem:[%s561] ss:$8 sm:$0x3]
      %v978 = vlaneseq
      %v979 = vshrl.u32 %v978, 7
      %v980 = vsub.s32 0, %v979
      %v981 = vrot.slane %v976, %v980
      %v982 = vlaneseq
      %v983 = vshrl.u32 %v982, 7
      %v984 = vsub.s32 1, %v983
      %v985 = vrot.slane %v976, %v984
      %986 = vrot.lane.b32.xlu0 %v981, 1
      %v987 = vpop.permute.xlu0 %986
      %988 = vrot.lane.b32.xlu0 %v985, 1
      %v989 = vpop.permute.xlu0 %988
      %v990 = vsel %vm576, %v987, %v989
      %v994 = vmul.f32 %v973, %v987
      %v995 = vmul.f32 %v974, %v990
      %v996 = vmul.f32 %v975, %v989
      %v997 = vld [vmem:[%s584] ss:$8 sm:$0x3]
      %v999 = vlaneseq
      %v1000 = vshrl.u32 %v999, 7
      %v1001 = vsub.s32 0, %v1000
      %v1002 = vrot.slane %v997, %v1001
      %v1003 = vlaneseq
      %v1004 = vshrl.u32 %v1003, 7
      %v1005 = vsub.s32 1, %v1004
      %v1006 = vrot.slane %v997, %v1005
      %1007 = vrot.lane.b32.xlu0 %v1002, 15
      %v1008 = vpop.permute.xlu0 %1007
      %1009 = vrot.lane.b32.xlu0 %v1006, 15
      %v1010 = vpop.permute.xlu0 %1009
      %v1011 = vsel %vm599, %v1008, %v1010
      %v1015 = vmul.f32 %v973, %v1008
      %v1016 = vmul.f32 %v974, %v1011
      %v1017 = vmul.f32 %v975, %v1010
      %v1018 = vld [vmem:[%s607] ss:$8 sm:$0x3]
      %v1020 = vlaneseq
      %v1021 = vshrl.u32 %v1020, 7
      %v1022 = vsub.s32 0, %v1021
      %v1023 = vrot.slane %v1018, %v1022
      %v1024 = vlaneseq
      %v1025 = vshrl.u32 %v1024, 7
      %v1026 = vsub.s32 1, %v1025
      %v1027 = vrot.slane %v1018, %v1026
      %1028 = vrot.lane.b32.xlu0 %v1023, 17
      %v1029 = vpop.permute.xlu0 %1028
      %1030 = vrot.lane.b32.xlu0 %v1027, 17
      %v1031 = vpop.permute.xlu0 %1030
      %v1032 = vsel %vm622, %v1029, %v1031
      %v1036 = vmul.f32 %v973, %v1029
      %v1037 = vmul.f32 %v974, %v1032
      %v1038 = vmul.f32 %v975, %v1031
      %1042 = vrot.lane.b32.xlu0 %v907, 127
      %v1043 = vpop.permute.xlu0 %1042
      %1044 = vrot.lane.b32.xlu0 %v908, 127
      %v1045 = vpop.permute.xlu0 %1044
      %1046 = vrot.lane.b32.xlu0 %v909, 127
      %v1047 = vpop.permute.xlu0 %1046
      %v1048 = vsel %vm550, %v1043, %v1045
      %v1049 = vsel %vm550, %v1045, %v1047
      %1053 = vrot.lane.b32.xlu0 %v949, 126
      %v1054 = vpop.permute.xlu0 %1053
      %1055 = vrot.lane.b32.xlu0 %v950, 126
      %v1056 = vpop.permute.xlu0 %1055
      %1057 = vrot.lane.b32.xlu0 %v951, 126
      %v1058 = vpop.permute.xlu0 %1057
      %v1059 = vsel %vm650, %v1054, %v1056
      %v1060 = vsel %vm650, %v1056, %v1058
      %1064 = vrot.lane.b32.xlu0 %v970, 112
      %v1065 = vpop.permute.xlu0 %1064
      %1066 = vrot.lane.b32.xlu0 %v971, 112
      %v1067 = vpop.permute.xlu0 %1066
      %1068 = vrot.lane.b32.xlu0 %v972, 112
      %v1069 = vpop.permute.xlu0 %1068
      %v1070 = vsel %vm662, %v1065, %v1067
      %v1071 = vsel %vm662, %v1067, %v1069
      %1072 = vrot.lane.b32.xlu0 %v908, 111
      %v1073 = vpop.permute.xlu0 %1072
      %1074 = vrot.lane.b32.xlu0 %v909, 111
      %v1075 = vpop.permute.xlu0 %1074
      %v1076 = vsel %vm504, %v1073, %v1075
      %1080 = vrot.lane.b32.xlu0 %v994, 110
      %v1081 = vpop.permute.xlu0 %1080
      %1082 = vrot.lane.b32.xlu0 %v995, 110
      %v1083 = vpop.permute.xlu0 %1082
      %1084 = vrot.lane.b32.xlu0 %v996, 110
      %v1085 = vpop.permute.xlu0 %1084
      %v1086 = vsel %vm679, %v1081, %v1083
      %v1087 = vsel %vm679, %v1083, %v1085
      %1091 = vrot.lane.b32.xlu0 %v1015, 96
      %v1092 = vpop.permute.xlu0 %1091
      %1093 = vrot.lane.b32.xlu0 %v1016, 96
      %v1094 = vpop.permute.xlu0 %1093
      %1095 = vrot.lane.b32.xlu0 %v1017, 96
      %v1096 = vpop.permute.xlu0 %1095
      %v1097 = vsel %vm691, %v1092, %v1094
      %v1098 = vsel %vm691, %v1094, %v1096
      %1102 = vrot.lane.b32.xlu0 %v973, 95
      %v1103 = vpop.permute.xlu0 %1102
      %1104 = vrot.lane.b32.xlu0 %v974, 95
      %v1105 = vpop.permute.xlu0 %1104
      %1106 = vrot.lane.b32.xlu0 %v975, 95
      %v1107 = vpop.permute.xlu0 %1106
      %v1108 = vsel %vm703, %v1103, %v1105
      %v1109 = vsel %vm703, %v1105, %v1107
      %1113 = vrot.lane.b32.xlu0 %v1036, 94
      %v1114 = vpop.permute.xlu0 %1113
      %1115 = vrot.lane.b32.xlu0 %v1037, 94
      %v1116 = vpop.permute.xlu0 %1115
      %1117 = vrot.lane.b32.xlu0 %v1038, 94
      %v1118 = vpop.permute.xlu0 %1117
      %v1119 = vsel %vm715, %v1114, %v1116
      %v1120 = vsel %vm715, %v1116, %v1118
      %v1121 = vld [vmem:[%s7] sm:$0xff]
      %1125 = vrot.lane.b32.xlu0 %v928, 17
      %v1126 = vpop.permute.xlu0 %1125
      %1127 = vrot.lane.b32.xlu0 %v929, 17
      %v1128 = vpop.permute.xlu0 %1127
      %1129 = vrot.lane.b32.xlu0 %v930, 17
      %v1130 = vpop.permute.xlu0 %1129
      %1131 = vrot.lane.b32.xlu0 %v1048, 17
      %v1132 = vpop.permute.xlu0 %1131
      %1133 = vrot.lane.b32.xlu0 %v1049, 17
      %v1134 = vpop.permute.xlu0 %1133
      %1135 = vrot.lane.b32.xlu0 %v1047, 17
      %v1136 = vpop.permute.xlu0 %1135
      %1137 = vrot.lane.b32.xlu0 %v1059, 17
      %v1138 = vpop.permute.xlu0 %1137
      %1139 = vrot.lane.b32.xlu0 %v1060, 17
      %v1140 = vpop.permute.xlu0 %1139
      %1141 = vrot.lane.b32.xlu0 %v1058, 17
      %v1142 = vpop.permute.xlu0 %1141
      %1143 = vrot.lane.b32.xlu0 %v1070, 17
      %v1144 = vpop.permute.xlu0 %1143
      %1145 = vrot.lane.b32.xlu0 %v1071, 17
      %v1146 = vpop.permute.xlu0 %1145
      %1147 = vrot.lane.b32.xlu0 %v1069, 17
      %v1148 = vpop.permute.xlu0 %1147
      %1149 = vrot.lane.b32.xlu0 %v1073, 17
      %v1150 = vpop.permute.xlu0 %1149
      %1151 = vrot.lane.b32.xlu0 %v1076, 17
      %v1152 = vpop.permute.xlu0 %1151
      %1153 = vrot.lane.b32.xlu0 %v1075, 17
      %v1154 = vpop.permute.xlu0 %1153
      %1155 = vrot.lane.b32.xlu0 %v1081, 17
      %v1156 = vpop.permute.xlu0 %1155
      %1157 = vrot.lane.b32.xlu0 %v1086, 17
      %v1158 = vpop.permute.xlu0 %1157
      %1159 = vrot.lane.b32.xlu0 %v1087, 17
      %v1160 = vpop.permute.xlu0 %1159
      %1161 = vrot.lane.b32.xlu0 %v1092, 17
      %v1162 = vpop.permute.xlu0 %1161
      %1163 = vrot.lane.b32.xlu0 %v1097, 17
      %v1164 = vpop.permute.xlu0 %1163
      %1165 = vrot.lane.b32.xlu0 %v1098, 17
      %v1166 = vpop.permute.xlu0 %1165
      %1167 = vrot.lane.b32.xlu0 %v1103, 17
      %v1168 = vpop.permute.xlu0 %1167
      %1169 = vrot.lane.b32.xlu0 %v1108, 17
      %v1170 = vpop.permute.xlu0 %1169
      %1171 = vrot.lane.b32.xlu0 %v1109, 17
      %v1172 = vpop.permute.xlu0 %1171
      %1173 = vrot.lane.b32.xlu0 %v1114, 17
      %v1174 = vpop.permute.xlu0 %1173
      %1175 = vrot.lane.b32.xlu0 %v1119, 17
      %v1176 = vpop.permute.xlu0 %1175
      %1177 = vrot.lane.b32.xlu0 %v1120, 17
      %v1178 = vpop.permute.xlu0 %1177
      %v1179 = vsel %vm622, %v1126, %v1128
      %v1180 = vsel %vm622, %v1128, %v1130
      %v1181 = vsel %vm622, %v1132, %v1134
      %v1182 = vsel %vm622, %v1134, %v1136
      %v1183 = vsel %vm622, %v1138, %v1140
      %v1184 = vsel %vm622, %v1140, %v1142
      %v1185 = vsel %vm622, %v1144, %v1146
      %v1186 = vsel %vm622, %v1146, %v1148
      %v1187 = vsel %vm622, %v1150, %v1152
      %v1188 = vsel %vm622, %v1152, %v1154
      %v1189 = vsel %vm622, %v1156, %v1158
      %v1190 = vsel %vm622, %v1158, %v1160
      %v1191 = vsel %vm622, %v1162, %v1164
      %v1192 = vsel %vm622, %v1164, %v1166
      %v1193 = vsel %vm622, %v1168, %v1170
      %v1194 = vsel %vm622, %v1170, %v1172
      %v1195 = vsel %vm622, %v1174, %v1176
      %v1196 = vsel %vm622, %v1176, %v1178
      %v1216 = vsel %vm812, %v1121, 0
      %1218 = vmatprep.subr.mxu0 %v1180
      %1219 = vmatpush1.msra.mxu0 %v1179
      %1220 = vmatprep.subr.mxu0 %v1182
      %1221 = vmatpush1.msra.mxu0 %v1181
      %1222 = vmatprep.subr.mxu0 %v1184
      %1223 = vmatpush1.msra.mxu0 %v1183
      %1224 = vmatprep.subr.mxu0 %v1186
      %1225 = vmatpush1.msra.mxu0 %v1185
      %1226 = vmatprep.subr.mxu0 %v1188
      %1227 = vmatpush1.msra.mxu0 %v1187
      %1228 = vmatprep.subr.mxu0 %v1190
      %1229 = vmatpush1.msra.mxu0 %v1189
      %1230 = vmatprep.subr.mxu0 %v1192
      %1231 = vmatpush1.msra.mxu0 %v1191
      %1232 = vmatprep.subr.mxu0 %v1194
      %1233 = vmatpush1.msra.mxu0 %v1193
      %1234 = vmatprep.subr.mxu0 %v1196
      %1235 = vmatpush1.msra.mxu0 %v1195
      %1236 = vmatprep.subr.mxu0 0.0
      %1237 = vmatpush1.msra.mxu0 0.0
      %1238 = vmatprep.subr.mxu0 0.0
      %1239 = vmatpush1.msra.mxu0 0.0
      %1240 = vmatprep.subr.mxu0 0.0
      %1241 = vmatpush1.msra.mxu0 0.0
      %1242 = vmatprep.subr.mxu0 0.0
      %1243 = vmatpush1.msra.mxu0 0.0
      %1244 = vmatprep.subr.mxu0 0.0
      %1245 = vmatpush1.msra.mxu0 0.0
      %1246 = vmatprep.subr.mxu0 0.0
      %1247 = vmatpush1.msra.mxu0 0.0
      %1248 = vmatprep.subr.mxu0 0.0
      %1249 = vmatpush1.msra.mxu0 0.0
      %1250 = vmatprep.subr.mxu0 0.0
      %1251 = vmatpush1.msra.mxu0 0.0
      %1252 = vmatprep.subr.mxu0 0.0
      %1253 = vmatpush1.msra.mxu0 0.0
      %1254 = vmatprep.subr.mxu0 0.0
      %1255 = vmatpush1.msra.mxu0 0.0
      %1256 = vmatprep.subr.mxu0 0.0
      %1257 = vmatpush1.msra.mxu0 0.0
      %1258 = vmatprep.subr.mxu0 0.0
      %1259 = vmatpush1.msra.mxu0 0.0
      %1260 = vmatprep.subr.mxu0 0.0
      %1261 = vmatpush1.msra.mxu0 0.0
      %1262 = vmatprep.subr.mxu0 0.0
      %1263 = vmatpush1.msra.mxu0 0.0
      %1264 = vmatprep.subr.mxu0 0.0
      %1265 = vmatpush1.msra.mxu0 0.0
      %1266 = vmatprep.subr.mxu0 0.0
      %1267 = vmatpush1.msra.mxu0 0.0
      %1268 = vmatprep.subr.mxu0 0.0
      %1269 = vmatpush1.msra.mxu0 0.0
      %1270 = vmatprep.subr.mxu0 0.0
      %1271 = vmatpush1.msra.mxu0 0.0
      %1272 = vmatprep.subr.mxu0 0.0
      %1273 = vmatpush1.msra.mxu0 0.0
      %1274 = vmatprep.subr.mxu0 0.0
      %1275 = vmatpush1.msra.mxu0 0.0
      %1276 = vmatprep.subr.mxu0 0.0
      %1277 = vmatpush1.msra.mxu0 0.0
      %1278 = vmatprep.subr.mxu0 0.0
      %1279 = vmatpush1.msra.mxu0 0.0
      %1280 = vmatprep.subr.mxu0 0.0
      %1281 = vmatpush1.msra.mxu0 0.0
      %1282 = vmatprep.mubr.f32.mxu0 0.0
      %1283 = vmatmul.mubr.f32.gmra.mrb[0].mxu0 %v1216
      %v1284 = vpop.f32.mrb[0].mxu0
      %v1285 = vadd.f32 0.0, %v1284
      %v1286 = vpop.f32.mrb[0].mxu0
      %v1287 = vadd.f32 0.0, %v1286
      %1288 = vdwg.mxu0
      %v1289 = vld [vmem:[%s8] sm:$0xff]
      %1291 = vset.pattern.permute.xlu0 0
      %1292 = vperm.xlu0 %1291, %v1289
      %v1293 = vpop.permute.xlu0 %1292
      %v1295 = vmul.f32 %v1285, %v1293
      %v1296 = vmul.f32 %v1287, %v1293
      %v1297 = vld [vmem:[%s9] sm:$0xff]
      %1299 = vset.pattern.permute.xlu0 0
      %1300 = vperm.xlu0 %1299, %v1297
      %v1301 = vpop.permute.xlu0 %1300
      %v1303 = vadd.f32 %v1295, %v1301
      %v1304 = vadd.f32 %v1296, %v1301
      %v1305 = vmax.f32 %v1303, 0.0
      %v1306 = vmax.f32 %v1304, 0.0
      %1307 = vst [vmem:[%s376] sm:$0xff] %v1305
      %1308 = vst [vmem:[%s376 + $0x8] sm:$0xff] %v1306
      %p1309 = scmp.lt.s32.totalorder %s21, 1
      %s1310 = scalar_select %p1309, %s21, 1
      %s1311 = smul.addr %s1310, 2
      %s1312 = smul.addr %s1311, 8
      %s1313 = scalar_lea.vmem %s10, %s1312
      // Predicated region
      $region61: #{up_forward.1} parent=59 // pred_check
        %p1314 = pneg %p259
      $region62: #{up_forward.1} parent=59 // pred_check_branch
        %1316 = sbr.rel (%p1314) target = $region64
      $region63: #{up_forward.1} parent=59 // pred_region
        _
      $region64: #{up_forward.1} parent=59 // pred_fallthru
        _
    $region60: #{up_forward.1} parent=5 // pred_fallthru
      _
    %p1317 = scmp.le.s32.totalorder 2, %s16
    // Predicated region
    $region65: #{up_forward.1} parent=5 // pred_check
      %p1318 = pneg %p1317
    $region66: #{up_forward.1} parent=5 // pred_check_branch
      %1320 = sbr.rel (%p1318) target = $region68
    $region67: #{up_forward.1} parent=5 // pred_region
      %s1321 = ssub.s32 %s16, 2
      // Predicated region
      $region69: #{up_forward.1} parent=67 // pred_check
        %p1322 = pneg %p265
      $region70: #{up_forward.1} parent=67 // pred_check_branch
        %1324 = sbr.rel (%p1322) target = $region72
      $region71: #{up_forward.1} parent=67 // pred_region
        %p1325 = scmp.lt.s32.totalorder %s22, 1
        %s1326 = scalar_select %p1325, %s22, 1
        %s1327 = smul.addr %s1326, 2
        %s1328 = smul.addr %s1327, 8
        %s1329 = scalar_lea.vmem %s10, %s1328
      $region72: #{up_forward.1} parent=67 // pred_fallthru
        _
    $region68: #{up_forward.1} parent=5 // pred_fallthru
      _
  $region6: #{up_forward.1} parent=0 // loop_footer
    %s20 = sadd.s32 1, %s16
  $region7: #{up_forward.1} parent=0 // loop_footer_branch
    %15 = sbr.rel target = $region3
  $region8: #{up_forward.1} parent=0 // loop_exit
    _

</llo_original>
